<compile_context>
chip_gen: v7x
topology: tpu7x:2x2x1
jax: 0.10.0
libtpu: 0.0.40
codegen_flags: <defaults>
</compile_context>

<pallas_src>
import functools

import jax
import jax.numpy as jnp
from jax import lax
from jax.experimental import pallas as pl
from jax.experimental.pallas import tpu as pltpu

_MIB = 1024 * 1024


# --------------------------------------------------------------------------- #
# Kernel
# --------------------------------------------------------------------------- #
def _patch_kernel(x_ref, o_ref, *, patch, wide):
    """x_ref: (B, Cb, R*P, W)   natural NCHW strip   (lane dim = W, dense)
       o_ref: (B, R, gw, Cb, pp) patch-major output  (lane dim = pp, dense)

       o[b, rr, j, c, r*P + k2] = x[b, c, rr*P + r, j*P + k2]
    """
    P = patch
    _, R, gw, _, _ = o_ref.shape

    def row_body(rr, carry):
        row0 = pl.multiple_of(rr * P, P)   # first image row of this patch-row
        # j is a Python loop so every lane offset below is a compile-time
        # constant (static lane slices always lower; gw is small for the
        # hyperpixel-style feature maps this kernel targets).
        for j in range(gw):
            if wide:
                # Build the flattened patch rows in registers and issue ONE
                # (Cb x pp)-wide store per (rr, j): unmasked vst rows when
                # pp >= 128, full sublane coverage over the channel dim.
                pieces = [x_ref[:, :, row0 + r, j * P:(j + 1) * P]
                          for r in range(P)]
                o_ref[:, rr, j, :, :] = jnp.concatenate(pieces, axis=-1)
            else:
                # Always-lowerable fallback: P-lane slices into the (already
                # lane-dense) output block; only the in-VMEM stores are
                # partial-lane, HBM traffic is identical.
                for r in range(P):
                    o_ref[:, rr, j, :, r * P:(r + 1) * P] = \
                        x_ref[:, :, row0 + r, j * P:(j + 1) * P]
        return carry

    lax.fori_loop(0, R, row_body, 0)


# --------------------------------------------------------------------------- #
# Blocking policy (padding- and generation-aware)
# --------------------------------------------------------------------------- #
def _round_up(x, m):
    return (x + m - 1) // m * m


def _sublane_multiple(dtype):
    return {4: 8, 2: 16, 1: 32}.get(jnp.dtype(dtype).itemsize, 8)


def _padded_bytes(shape, dtype):
    """VMEM bytes of a block after Mosaic's (8/16/32, 128) tile padding."""
    itemsize = jnp.dtype(dtype).itemsize
    lead = 1
    for d in shape[:-2]:
        lead *= int(d)
    sub = _round_up(int(shape[-2]), _sublane_multiple(dtype))
    lane = _round_up(int(shape[-1]), 128)
    return lead * sub * lane * itemsize


def _vmem_capacity_bytes():
    try:
        cap = getattr(pltpu.get_tpu_info(), "vmem_capacity_bytes", None)
        if cap:
            return int(cap)
    except Exception:
        pass
    return 64 * _MIB               # conservative (v7x per-TensorCore) default


def _double_buffered_bytes(B, Cb, R, P, gw, W, dtype):
    in_blk = (B, Cb, R * P, W)
    out_blk = (B, R, gw, Cb, P * P)
    # Default pipelining keeps 2 buffers per operand (no pl.Buffered on purpose).
    return 2 * _padded_bytes(in_blk, dtype) + 2 * _padded_bytes(out_blk, dtype)


def _legal_rows(R, gh, P, sub):
    return R == gh or (R * P) % sub == 0


def _legal_chans(Cb, C, sub):
    return Cb == C or Cb % sub == 0


def _choose_blocking(B, C, H, W, P, dtype, budget_bytes):
    gh, gw = H // P, W // P
    sub = _sublane_multiple(dtype)
    r_cands = [r for r in range(gh, 0, -1)
               if gh % r == 0 and _legal_rows(r, gh, P, sub)]
    c_cands = [c for c in range(C, 0, -1)
               if C % c == 0 and _legal_chans(c, C, sub)]
    best = None
    for cb in c_cands:                       # prefer full-C blocks (widest sublane stores)
        for r in r_cands:                    # then the largest strip that fits
            if _double_buffered_bytes(B, cb, r, P, gw, W, dtype) > budget_bytes:
                continue
            if best is None:
                best = (r, cb)
            if (gh // r) * (C // cb) >= 2:   # >=2 grid steps keeps both v7x cores busy
                return r, cb
    if best is not None:
        return best
    return r_cands[-1], c_cands[-1]          # nothing fits the budget: smallest legal


# --------------------------------------------------------------------------- #
# Wrapper
# --------------------------------------------------------------------------- #
def patch_embedding(im, patch_size, *, rows_per_step=None, channel_block=None,
                    prefer_wide_stores=True):
    """im: (B, C, H, W) NCHW.  Returns (B, num_patches, C, patch_size**2)."""
    B, C, H, W = im.shape
    P = int(patch_size)
    if H % P != 0 or W % P != 0:
        raise ValueError("image dimensions must be divisible by the patch size")
    gh, gw = H // P, W // P
    pp = P * P
    dtype = jnp.dtype(im.dtype)
    itemsize = dtype.itemsize
    sub = _sublane_multiple(dtype)

    # Generation-aware VMEM policy (v5e/v6e: 128 MiB, v7x: 64 MiB per core).
    vmem_cap = _vmem_capacity_bytes()
    block_budget = (3 * vmem_cap) // 8                       # for 2x(in)+2x(out)
    vmem_limit = max(32 * _MIB, min(64 * _MIB, (3 * vmem_cap) // 4))

    auto_r, auto_c = _choose_blocking(B, C, H, W, P, dtype, block_budget)
    R = int(rows_per_step) if rows_per_step is not None else auto_r
    Cb = int(channel_block) if channel_block is not None else auto_c
    if gh % R != 0 or not _legal_rows(R, gh, P, sub):
        raise ValueError(
            f"rows_per_step={R} must divide H//patch and keep R*patch a multiple of {sub}")
    if C % Cb != 0 or not _legal_chans(Cb, C, sub):
        raise ValueError(
            f"channel_block={Cb} must divide C and be a multiple of {sub} (or equal C)")

    grid = (gh // R, C // Cb)

    def _call(wide):
        kernel = functools.partial(_patch_kernel, patch=P, wide=wide)
        return pl.pallas_call(
            kernel,
            out_shape=jax.ShapeDtypeStruct((B, gh, gw, C, pp), im.dtype),
            grid_spec=pltpu.PrefetchScalarGridSpec(
                num_scalar_prefetch=0,
                grid=grid,
                in_specs=[
                    # Natural NCHW strip: last two block dims are (R*P, W) —
                    # W equals the full dim, R*P is a sublane multiple (or gh*P).
                    pl.BlockSpec((B, Cb, R * P, W), lambda i, ci: (0, ci, i, 0)),
                ],
                # Lane-dense output block: last two dims (Cb, pp) — pp equals
                # the full dim, Cb is a sublane multiple (or full C).
                out_specs=pl.BlockSpec((B, R, gw, Cb, pp),
                                       lambda i, ci: (0, i, 0, ci, 0)),
            ),
            compiler_params=pltpu.CompilerParams(
                dimension_semantics=("parallel", "parallel"),
                vmem_limit_bytes=int(vmem_limit),
            ),
            cost_estimate=pl.CostEstimate(
                flops=0, transcendentals=0,
                bytes_accessed=2 * B * C * H * W * itemsize,
            ),
        )(im)

    if prefer_wide_stores:
        try:
            out5 = jax.block_until_ready(_call(True))
        except Exception:
            # Mosaic build without unaligned lane-concatenate support:
            # fall back to the slice-copy variant (identical semantics,
            # identical HBM traffic, narrower in-VMEM stores).
            out5 = _call(False)
    else:
        out5 = _call(False)

    # Pure metadata reshape to the module's (B, N, C, P*P) output layout.
    return out5.reshape(B, gh * gw, C, pp)


# --------------------------------------------------------------------------- #
# Pure-JAX reference (mirrors the PyTorch slice/stack/flatten loop)
# --------------------------------------------------------------------------- #
def _reference(im, patch_size):
    B, C, H, W = im.shape
    gh, gw = H // patch_size, W // patch_size
    y = im.reshape(B, C, gh, patch_size, gw, patch_size)
    y = jnp.transpose(y, (0, 2, 4, 1, 3, 5))          # (B, gh, gw, C, P, P)
    return y.reshape(B, gh * gw, C, patch_size * patch_size)


if __name__ == "__main__":
    key = jax.random.PRNGKey(0)

    # Small shapes consistent with the module's patch slicing.
    B, C, H, W = 2, 4, 16, 16
    patch_size = 4
    im = jax.random.normal(key, (B, C, H, W), dtype=jnp.float32)

    z = jax.block_until_ready(patch_embedding(im, patch_size))
    expected_shape = (B, (H // patch_size) * (W // patch_size),
                      C, patch_size * patch_size)
    assert z.shape == expected_shape, (z.shape, expected_shape)
    assert jnp.allclose(z, _reference(im, patch_size)), "mismatch vs reference"

    # Larger image with an explicit multi-strip blocking (grid = (4, 1)).
    im2 = jax.random.normal(jax.random.PRNGKey(0), (2, 3, 32, 32),
                            dtype=jnp.float32)
    z2 = jax.block_until_ready(patch_embedding(im2, 4, rows_per_step=2))
    assert z2.shape == (2, 64, 3, 16), z2.shape
    assert jnp.allclose(z2, _reference(im2, 4)), "mismatch (multi-strip path)"

    # Explicitly exercise the always-lowerable slice-copy fallback as well.
    z3 = jax.block_until_ready(
        patch_embedding(im, patch_size, prefer_wide_stores=False))
    assert jnp.allclose(z3, _reference(im, patch_size)), "mismatch (fallback path)"

    print("KERNEL_OK")
</pallas_src>

<mosaic_0001>
module attributes {stable_mosaic.version = 11 : i64} {
  func.func @_patch_kernel(%arg0: i32, %arg1: i32, %arg2: memref<2x4x8x16xf32, #tpu.memory_space<vmem>>, %arg3: memref<2x2x4x4x16xf32, #tpu.memory_space<vmem>>) attributes {dimension_semantics = [#tpu.dimension_semantics<parallel>, #tpu.dimension_semantics<parallel>], iteration_bounds = array<i64: 2, 1>, scalar_prefetch = 0 : i64, scratch_operands = 0 : i64, tpu.core_type = #tpu.core_type<tc>, window_params = [{transform_indices = @transform_0, window_bounds = array<i64: 2, 4, 8, 16>}, {transform_indices = @transform_1, window_bounds = array<i64: 2, 2, 4, 4, 16>}]} {
    %c0_i32 = arith.constant 0 : i32
    %c2_i32 = arith.constant 2 : i32
    %0 = arith.addi %c0_i32, %c2_i32 : i32
    %c1_i32 = arith.constant 1 : i32
    scf.for %arg4 = %c0_i32 to %0 step %c1_i32  : i32 {
      %c4_i32 = arith.constant 4 : i32
      %1 = arith.muli %arg4, %c4_i32 : i32
      %2 = tpu.assume_multiple %1, 4 : i32
      %c0_i32_1 = arith.constant 0 : i32
      %3 = arith.addi %2, %c0_i32_1 : i32
      %c0 = arith.constant 0 : index
      %c0_2 = arith.constant 0 : index
      %4 = arith.index_cast %3 : i32 to index
      %c0_3 = arith.constant 0 : index
      %5 = vector.load %arg2[%c0, %c0_2, %4, %c0_3] : memref<2x4x8x16xf32, #tpu.memory_space<vmem>>, vector<2x4x1x4xf32>
      %6 = vector.shape_cast %5 : vector<2x4x1x4xf32> to vector<2x4x4xf32>
      %c1_i32_4 = arith.constant 1 : i32
      %7 = arith.addi %2, %c1_i32_4 : i32
      %c0_5 = arith.constant 0 : index
      %c0_6 = arith.constant 0 : index
      %8 = arith.index_cast %7 : i32 to index
      %c0_7 = arith.constant 0 : index
      %9 = vector.load %arg2[%c0_5, %c0_6, %8, %c0_7] : memref<2x4x8x16xf32, #tpu.memory_space<vmem>>, vector<2x4x1x4xf32>
      %10 = vector.shape_cast %9 : vector<2x4x1x4xf32> to vector<2x4x4xf32>
      %c2_i32_8 = arith.constant 2 : i32
      %11 = arith.addi %2, %c2_i32_8 : i32
      %c0_9 = arith.constant 0 : index
      %c0_10 = arith.constant 0 : index
      %12 = arith.index_cast %11 : i32 to index
      %c0_11 = arith.constant 0 : index
      %13 = vector.load %arg2[%c0_9, %c0_10, %12, %c0_11] : memref<2x4x8x16xf32, #tpu.memory_space<vmem>>, vector<2x4x1x4xf32>
      %14 = vector.shape_cast %13 : vector<2x4x1x4xf32> to vector<2x4x4xf32>
      %c3_i32 = arith.constant 3 : i32
      %15 = arith.addi %2, %c3_i32 : i32
      %c0_12 = arith.constant 0 : index
      %c0_13 = arith.constant 0 : index
      %16 = arith.index_cast %15 : i32 to index
      %c0_14 = arith.constant 0 : index
      %17 = vector.load %arg2[%c0_12, %c0_13, %16, %c0_14] : memref<2x4x8x16xf32, #tpu.memory_space<vmem>>, vector<2x4x1x4xf32>
      %18 = vector.shape_cast %17 : vector<2x4x1x4xf32> to vector<2x4x4xf32>
      %19 = tpu.concatenate %6, %10, %14, %18 in 2 : vector<2x4x4xf32>, vector<2x4x4xf32>, vector<2x4x4xf32>, vector<2x4x4xf32> -> vector<2x4x16xf32>
      %c0_15 = arith.constant 0 : index
      %20 = arith.index_cast %arg4 : i32 to index
      %c0_16 = arith.constant 0 : index
      %c0_17 = arith.constant 0 : index
      %c0_18 = arith.constant 0 : index
      %21 = vector.load %arg3[%c0_15, %20, %c0_16, %c0_17, %c0_18] : memref<2x2x4x4x16xf32, #tpu.memory_space<vmem>>, vector<2x1x1x4x16xf32>
      %22 = vector.shape_cast %21 : vector<2x1x1x4x16xf32> to vector<2x4x16xf32>
      %23 = vector.shape_cast %19 : vector<2x4x16xf32> to vector<2x1x1x4x16xf32>
      tpu.vector_store %arg3[%c0_15, %20, %c0_16, %c0_17, %c0_18], %23 {strides = array<i32>} : memref<2x2x4x4x16xf32, #tpu.memory_space<vmem>>, vector<2x1x1x4x16xf32>,
      %c0_i32_19 = arith.constant 0 : i32
      %24 = arith.addi %2, %c0_i32_19 : i32
      %c0_20 = arith.constant 0 : index
      %c0_21 = arith.constant 0 : index
      %25 = arith.index_cast %24 : i32 to index
      %c4 = arith.constant 4 : index
      %26 = vector.load %arg2[%c0_20, %c0_21, %25, %c4] : memref<2x4x8x16xf32, #tpu.memory_space<vmem>>, vector<2x4x1x4xf32>
      %27 = vector.shape_cast %26 : vector<2x4x1x4xf32> to vector<2x4x4xf32>
      %c1_i32_22 = arith.constant 1 : i32
      %28 = arith.addi %2, %c1_i32_22 : i32
      %c0_23 = arith.constant 0 : index
      %c0_24 = arith.constant 0 : index
      %29 = arith.index_cast %28 : i32 to index
      %c4_25 = arith.constant 4 : index
      %30 = vector.load %arg2[%c0_23, %c0_24, %29, %c4_25] : memref<2x4x8x16xf32, #tpu.memory_space<vmem>>, vector<2x4x1x4xf32>
      %31 = vector.shape_cast %30 : vector<2x4x1x4xf32> to vector<2x4x4xf32>
      %c2_i32_26 = arith.constant 2 : i32
      %32 = arith.addi %2, %c2_i32_26 : i32
      %c0_27 = arith.constant 0 : index
      %c0_28 = arith.constant 0 : index
      %33 = arith.index_cast %32 : i32 to index
      %c4_29 = arith.constant 4 : index
      %34 = vector.load %arg2[%c0_27, %c0_28, %33, %c4_29] : memref<2x4x8x16xf32, #tpu.memory_space<vmem>>, vector<2x4x1x4xf32>
      %35 = vector.shape_cast %34 : vector<2x4x1x4xf32> to vector<2x4x4xf32>
      %c3_i32_30 = arith.constant 3 : i32
      %36 = arith.addi %2, %c3_i32_30 : i32
      %c0_31 = arith.constant 0 : index
      %c0_32 = arith.constant 0 : index
      %37 = arith.index_cast %36 : i32 to index
      %c4_33 = arith.constant 4 : index
      %38 = vector.load %arg2[%c0_31, %c0_32, %37, %c4_33] : memref<2x4x8x16xf32, #tpu.memory_space<vmem>>, vector<2x4x1x4xf32>
      %39 = vector.shape_cast %38 : vector<2x4x1x4xf32> to vector<2x4x4xf32>
      %40 = tpu.concatenate %27, %31, %35, %39 in 2 : vector<2x4x4xf32>, vector<2x4x4xf32>, vector<2x4x4xf32>, vector<2x4x4xf32> -> vector<2x4x16xf32>
      %c0_34 = arith.constant 0 : index
      %41 = arith.index_cast %arg4 : i32 to index
      %c1 = arith.constant 1 : index
      %c0_35 = arith.constant 0 : index
      %c0_36 = arith.constant 0 : index
      %42 = vector.load %arg3[%c0_34, %41, %c1, %c0_35, %c0_36] : memref<2x2x4x4x16xf32, #tpu.memory_space<vmem>>, vector<2x1x1x4x16xf32>
      %43 = vector.shape_cast %42 : vector<2x1x1x4x16xf32> to vector<2x4x16xf32>
      %44 = vector.shape_cast %40 : vector<2x4x16xf32> to vector<2x1x1x4x16xf32>
      tpu.vector_store %arg3[%c0_34, %41, %c1, %c0_35, %c0_36], %44 {strides = array<i32>} : memref<2x2x4x4x16xf32, #tpu.memory_space<vmem>>, vector<2x1x1x4x16xf32>,
      %c0_i32_37 = arith.constant 0 : i32
      %45 = arith.addi %2, %c0_i32_37 : i32
      %c0_38 = arith.constant 0 : index
      %c0_39 = arith.constant 0 : index
      %46 = arith.index_cast %45 : i32 to index
      %c8 = arith.constant 8 : index
      %47 = vector.load %arg2[%c0_38, %c0_39, %46, %c8] : memref<2x4x8x16xf32, #tpu.memory_space<vmem>>, vector<2x4x1x4xf32>
      %48 = vector.shape_cast %47 : vector<2x4x1x4xf32> to vector<2x4x4xf32>
      %c1_i32_40 = arith.constant 1 : i32
      %49 = arith.addi %2, %c1_i32_40 : i32
      %c0_41 = arith.constant 0 : index
      %c0_42 = arith.constant 0 : index
      %50 = arith.index_cast %49 : i32 to index
      %c8_43 = arith.constant 8 : index
      %51 = vector.load %arg2[%c0_41, %c0_42, %50, %c8_43] : memref<2x4x8x16xf32, #tpu.memory_space<vmem>>, vector<2x4x1x4xf32>
      %52 = vector.shape_cast %51 : vector<2x4x1x4xf32> to vector<2x4x4xf32>
      %c2_i32_44 = arith.constant 2 : i32
      %53 = arith.addi %2, %c2_i32_44 : i32
      %c0_45 = arith.constant 0 : index
      %c0_46 = arith.constant 0 : index
      %54 = arith.index_cast %53 : i32 to index
      %c8_47 = arith.constant 8 : index
      %55 = vector.load %arg2[%c0_45, %c0_46, %54, %c8_47] : memref<2x4x8x16xf32, #tpu.memory_space<vmem>>, vector<2x4x1x4xf32>
      %56 = vector.shape_cast %55 : vector<2x4x1x4xf32> to vector<2x4x4xf32>
      %c3_i32_48 = arith.constant 3 : i32
      %57 = arith.addi %2, %c3_i32_48 : i32
      %c0_49 = arith.constant 0 : index
      %c0_50 = arith.constant 0 : index
      %58 = arith.index_cast %57 : i32 to index
      %c8_51 = arith.constant 8 : index
      %59 = vector.load %arg2[%c0_49, %c0_50, %58, %c8_51] : memref<2x4x8x16xf32, #tpu.memory_space<vmem>>, vector<2x4x1x4xf32>
      %60 = vector.shape_cast %59 : vector<2x4x1x4xf32> to vector<2x4x4xf32>
      %61 = tpu.concatenate %48, %52, %56, %60 in 2 : vector<2x4x4xf32>, vector<2x4x4xf32>, vector<2x4x4xf32>, vector<2x4x4xf32> -> vector<2x4x16xf32>
      %c0_52 = arith.constant 0 : index
      %62 = arith.index_cast %arg4 : i32 to index
      %c2 = arith.constant 2 : index
      %c0_53 = arith.constant 0 : index
      %c0_54 = arith.constant 0 : index
      %63 = vector.load %arg3[%c0_52, %62, %c2, %c0_53, %c0_54] : memref<2x2x4x4x16xf32, #tpu.memory_space<vmem>>, vector<2x1x1x4x16xf32>
      %64 = vector.shape_cast %63 : vector<2x1x1x4x16xf32> to vector<2x4x16xf32>
      %65 = vector.shape_cast %61 : vector<2x4x16xf32> to vector<2x1x1x4x16xf32>
      tpu.vector_store %arg3[%c0_52, %62, %c2, %c0_53, %c0_54], %65 {strides = array<i32>} : memref<2x2x4x4x16xf32, #tpu.memory_space<vmem>>, vector<2x1x1x4x16xf32>,
      %c0_i32_55 = arith.constant 0 : i32
      %66 = arith.addi %2, %c0_i32_55 : i32
      %c0_56 = arith.constant 0 : index
      %c0_57 = arith.constant 0 : index
      %67 = arith.index_cast %66 : i32 to index
      %c12 = arith.constant 12 : index
      %68 = vector.load %arg2[%c0_56, %c0_57, %67, %c12] : memref<2x4x8x16xf32, #tpu.memory_space<vmem>>, vector<2x4x1x4xf32>
      %69 = vector.shape_cast %68 : vector<2x4x1x4xf32> to vector<2x4x4xf32>
      %c1_i32_58 = arith.constant 1 : i32
      %70 = arith.addi %2, %c1_i32_58 : i32
      %c0_59 = arith.constant 0 : index
      %c0_60 = arith.constant 0 : index
      %71 = arith.index_cast %70 : i32 to index
      %c12_61 = arith.constant 12 : index
      %72 = vector.load %arg2[%c0_59, %c0_60, %71, %c12_61] : memref<2x4x8x16xf32, #tpu.memory_space<vmem>>, vector<2x4x1x4xf32>
      %73 = vector.shape_cast %72 : vector<2x4x1x4xf32> to vector<2x4x4xf32>
      %c2_i32_62 = arith.constant 2 : i32
      %74 = arith.addi %2, %c2_i32_62 : i32
      %c0_63 = arith.constant 0 : index
      %c0_64 = arith.constant 0 : index
      %75 = arith.index_cast %74 : i32 to index
      %c12_65 = arith.constant 12 : index
      %76 = vector.load %arg2[%c0_63, %c0_64, %75, %c12_65] : memref<2x4x8x16xf32, #tpu.memory_space<vmem>>, vector<2x4x1x4xf32>
      %77 = vector.shape_cast %76 : vector<2x4x1x4xf32> to vector<2x4x4xf32>
      %c3_i32_66 = arith.constant 3 : i32
      %78 = arith.addi %2, %c3_i32_66 : i32
      %c0_67 = arith.constant 0 : index
      %c0_68 = arith.constant 0 : index
      %79 = arith.index_cast %78 : i32 to index
      %c12_69 = arith.constant 12 : index
      %80 = vector.load %arg2[%c0_67, %c0_68, %79, %c12_69] : memref<2x4x8x16xf32, #tpu.memory_space<vmem>>, vector<2x4x1x4xf32>
      %81 = vector.shape_cast %80 : vector<2x4x1x4xf32> to vector<2x4x4xf32>
      %82 = tpu.concatenate %69, %73, %77, %81 in 2 : vector<2x4x4xf32>, vector<2x4x4xf32>, vector<2x4x4xf32>, vector<2x4x4xf32> -> vector<2x4x16xf32>
      %c0_70 = arith.constant 0 : index
      %83 = arith.index_cast %arg4 : i32 to index
      %c3 = arith.constant 3 : index
      %c0_71 = arith.constant 0 : index
      %c0_72 = arith.constant 0 : index
      %84 = vector.load %arg3[%c0_70, %83, %c3, %c0_71, %c0_72] : memref<2x2x4x4x16xf32, #tpu.memory_space<vmem>>, vector<2x1x1x4x16xf32>
      %85 = vector.shape_cast %84 : vector<2x1x1x4x16xf32> to vector<2x4x16xf32>
      %86 = vector.shape_cast %82 : vector<2x4x16xf32> to vector<2x1x1x4x16xf32>
      tpu.vector_store %arg3[%c0_70, %83, %c3, %c0_71, %c0_72], %86 {strides = array<i32>} : memref<2x2x4x4x16xf32, #tpu.memory_space<vmem>>, vector<2x1x1x4x16xf32>,
    }
    %c2_i32_0 = arith.constant 2 : i32
    return
  }
  func.func @transform_0(%arg0: i32, %arg1: i32) -> (i32, i32, i32, i32) {
    %c0_i32 = arith.constant 0 : i32
    %c0_i32_0 = arith.constant 0 : i32
    %c0_i32_1 = arith.constant 0 : i32
    return %c0_i32, %arg1, %arg0, %c0_i32_0 : i32, i32, i32, i32
  }
  func.func @transform_1(%arg0: i32, %arg1: i32) -> (i32, i32, i32, i32, i32) {
    %c0_i32 = arith.constant 0 : i32
    %c0_i32_0 = arith.constant 0 : i32
    %c0_i32_1 = arith.constant 0 : i32
    %c0_i32_2 = arith.constant 0 : i32
    return %c0_i32, %arg0, %c0_i32_0, %arg1, %c0_i32_1 : i32, i32, i32, i32, i32
  }
}

module attributes {stable_mosaic.version = 11 : i64} {
  func.func @_patch_kernel(%arg0: i32, %arg1: i32, %arg2: memref<2x4x8x16xf32, #tpu.memory_space<vmem>>, %arg3: memref<2x2x4x4x16xf32, #tpu.memory_space<vmem>>) attributes {dimension_semantics = [#tpu.dimension_semantics<parallel>, #tpu.dimension_semantics<parallel>], iteration_bounds = array<i64: 2, 1>, scalar_prefetch = 0 : i64, scratch_operands = 0 : i64, tpu.core_type = #tpu.core_type<tc>, window_params = [{transform_indices = @transform_0, window_bounds = array<i64: 2, 4, 8, 16>}, {transform_indices = @transform_1, window_bounds = array<i64: 2, 2, 4, 4, 16>}]} {
    %c0_i32 = arith.constant 0 : i32
    %c2_i32 = arith.constant 2 : i32
    %0 = arith.addi %c0_i32, %c2_i32 : i32
    %c1_i32 = arith.constant 1 : i32
    scf.for %arg4 = %c0_i32 to %0 step %c1_i32  : i32 {
      %c4_i32 = arith.constant 4 : i32
      %1 = arith.muli %arg4, %c4_i32 : i32
      %2 = tpu.assume_multiple %1, 4 : i32
      %c0_i32_1 = arith.constant 0 : i32
      %3 = arith.addi %2, %c0_i32_1 : i32
      %c0 = arith.constant 0 : index
      %c0_2 = arith.constant 0 : index
      %4 = arith.index_cast %3 : i32 to index
      %c0_3 = arith.constant 0 : index
      %5 = vector.load %arg2[%c0, %c0_2, %4, %c0_3] : memref<2x4x8x16xf32, #tpu.memory_space<vmem>>, vector<2x4x1x4xf32>
      %6 = vector.shape_cast %5 : vector<2x4x1x4xf32> to vector<2x4x4xf32>
      %c0_4 = arith.constant 0 : index
      %7 = arith.index_cast %arg4 : i32 to index
      %c0_5 = arith.constant 0 : index
      %c0_6 = arith.constant 0 : index
      %c0_7 = arith.constant 0 : index
      %8 = vector.load %arg3[%c0_4, %7, %c0_5, %c0_6, %c0_7] : memref<2x2x4x4x16xf32, #tpu.memory_space<vmem>>, vector<2x1x1x4x4xf32>
      %9 = vector.shape_cast %8 : vector<2x1x1x4x4xf32> to vector<2x4x4xf32>
      %10 = vector.shape_cast %6 : vector<2x4x4xf32> to vector<2x1x1x4x4xf32>
      tpu.vector_store %arg3[%c0_4, %7, %c0_5, %c0_6, %c0_7], %10 {strides = array<i32>} : memref<2x2x4x4x16xf32, #tpu.memory_space<vmem>>, vector<2x1x1x4x4xf32>,
      %c1_i32_8 = arith.constant 1 : i32
      %11 = arith.addi %2, %c1_i32_8 : i32
      %c0_9 = arith.constant 0 : index
      %c0_10 = arith.constant 0 : index
      %12 = arith.index_cast %11 : i32 to index
      %c0_11 = arith.constant 0 : index
      %13 = vector.load %arg2[%c0_9, %c0_10, %12, %c0_11] : memref<2x4x8x16xf32, #tpu.memory_space<vmem>>, vector<2x4x1x4xf32>
      %14 = vector.shape_cast %13 : vector<2x4x1x4xf32> to vector<2x4x4xf32>
      %c0_12 = arith.constant 0 : index
      %15 = arith.index_cast %arg4 : i32 to index
      %c0_13 = arith.constant 0 : index
      %c0_14 = arith.constant 0 : index
      %c4 = arith.constant 4 : index
      %16 = vector.load %arg3[%c0_12, %15, %c0_13, %c0_14, %c4] : memref<2x2x4x4x16xf32, #tpu.memory_space<vmem>>, vector<2x1x1x4x4xf32>
      %17 = vector.shape_cast %16 : vector<2x1x1x4x4xf32> to vector<2x4x4xf32>
      %18 = vector.shape_cast %14 : vector<2x4x4xf32> to vector<2x1x1x4x4xf32>
      tpu.vector_store %arg3[%c0_12, %15, %c0_13, %c0_14, %c4], %18 {strides = array<i32>} : memref<2x2x4x4x16xf32, #tpu.memory_space<vmem>>, vector<2x1x1x4x4xf32>,
      %c2_i32_15 = arith.constant 2 : i32
      %19 = arith.addi %2, %c2_i32_15 : i32
      %c0_16 = arith.constant 0 : index
      %c0_17 = arith.constant 0 : index
      %20 = arith.index_cast %19 : i32 to index
      %c0_18 = arith.constant 0 : index
      %21 = vector.load %arg2[%c0_16, %c0_17, %20, %c0_18] : memref<2x4x8x16xf32, #tpu.memory_space<vmem>>, vector<2x4x1x4xf32>
      %22 = vector.shape_cast %21 : vector<2x4x1x4xf32> to vector<2x4x4xf32>
      %c0_19 = arith.constant 0 : index
      %23 = arith.index_cast %arg4 : i32 to index
      %c0_20 = arith.constant 0 : index
      %c0_21 = arith.constant 0 : index
      %c8 = arith.constant 8 : index
      %24 = vector.load %arg3[%c0_19, %23, %c0_20, %c0_21, %c8] : memref<2x2x4x4x16xf32, #tpu.memory_space<vmem>>, vector<2x1x1x4x4xf32>
      %25 = vector.shape_cast %24 : vector<2x1x1x4x4xf32> to vector<2x4x4xf32>
      %26 = vector.shape_cast %22 : vector<2x4x4xf32> to vector<2x1x1x4x4xf32>
      tpu.vector_store %arg3[%c0_19, %23, %c0_20, %c0_21, %c8], %26 {strides = array<i32>} : memref<2x2x4x4x16xf32, #tpu.memory_space<vmem>>, vector<2x1x1x4x4xf32>,
      %c3_i32 = arith.constant 3 : i32
      %27 = arith.addi %2, %c3_i32 : i32
      %c0_22 = arith.constant 0 : index
      %c0_23 = arith.constant 0 : index
      %28 = arith.index_cast %27 : i32 to index
      %c0_24 = arith.constant 0 : index
      %29 = vector.load %arg2[%c0_22, %c0_23, %28, %c0_24] : memref<2x4x8x16xf32, #tpu.memory_space<vmem>>, vector<2x4x1x4xf32>
      %30 = vector.shape_cast %29 : vector<2x4x1x4xf32> to vector<2x4x4xf32>
      %c0_25 = arith.constant 0 : index
      %31 = arith.index_cast %arg4 : i32 to index
      %c0_26 = arith.constant 0 : index
      %c0_27 = arith.constant 0 : index
      %c12 = arith.constant 12 : index
      %32 = vector.load %arg3[%c0_25, %31, %c0_26, %c0_27, %c12] : memref<2x2x4x4x16xf32, #tpu.memory_space<vmem>>, vector<2x1x1x4x4xf32>
      %33 = vector.shape_cast %32 : vector<2x1x1x4x4xf32> to vector<2x4x4xf32>
      %34 = vector.shape_cast %30 : vector<2x4x4xf32> to vector<2x1x1x4x4xf32>
      tpu.vector_store %arg3[%c0_25, %31, %c0_26, %c0_27, %c12], %34 {strides = array<i32>} : memref<2x2x4x4x16xf32, #tpu.memory_space<vmem>>, vector<2x1x1x4x4xf32>,
      %c0_i32_28 = arith.constant 0 : i32
      %35 = arith.addi %2, %c0_i32_28 : i32
      %c0_29 = arith.constant 0 : index
      %c0_30 = arith.constant 0 : index
      %36 = arith.index_cast %35 : i32 to index
      %c4_31 = arith.constant 4 : index
      %37 = vector.load %arg2[%c0_29, %c0_30, %36, %c4_31] : memref<2x4x8x16xf32, #tpu.memory_space<vmem>>, vector<2x4x1x4xf32>
      %38 = vector.shape_cast %37 : vector<2x4x1x4xf32> to vector<2x4x4xf32>
      %c0_32 = arith.constant 0 : index
      %39 = arith.index_cast %arg4 : i32 to index
      %c1 = arith.constant 1 : index
      %c0_33 = arith.constant 0 : index
      %c0_34 = arith.constant 0 : index
      %40 = vector.load %arg3[%c0_32, %39, %c1, %c0_33, %c0_34] : memref<2x2x4x4x16xf32, #tpu.memory_space<vmem>>, vector<2x1x1x4x4xf32>
      %41 = vector.shape_cast %40 : vector<2x1x1x4x4xf32> to vector<2x4x4xf32>
      %42 = vector.shape_cast %38 : vector<2x4x4xf32> to vector<2x1x1x4x4xf32>
      tpu.vector_store %arg3[%c0_32, %39, %c1, %c0_33, %c0_34], %42 {strides = array<i32>} : memref<2x2x4x4x16xf32, #tpu.memory_space<vmem>>, vector<2x1x1x4x4xf32>,
      %c1_i32_35 = arith.constant 1 : i32
      %43 = arith.addi %2, %c1_i32_35 : i32
      %c0_36 = arith.constant 0 : index
      %c0_37 = arith.constant 0 : index
      %44 = arith.index_cast %43 : i32 to index
      %c4_38 = arith.constant 4 : index
      %45 = vector.load %arg2[%c0_36, %c0_37, %44, %c4_38] : memref<2x4x8x16xf32, #tpu.memory_space<vmem>>, vector<2x4x1x4xf32>
      %46 = vector.shape_cast %45 : vector<2x4x1x4xf32> to vector<2x4x4xf32>
      %c0_39 = arith.constant 0 : index
      %47 = arith.index_cast %arg4 : i32 to index
      %c1_40 = arith.constant 1 : index
      %c0_41 = arith.constant 0 : index
      %c4_42 = arith.constant 4 : index
      %48 = vector.load %arg3[%c0_39, %47, %c1_40, %c0_41, %c4_42] : memref<2x2x4x4x16xf32, #tpu.memory_space<vmem>>, vector<2x1x1x4x4xf32>
      %49 = vector.shape_cast %48 : vector<2x1x1x4x4xf32> to vector<2x4x4xf32>
      %50 = vector.shape_cast %46 : vector<2x4x4xf32> to vector<2x1x1x4x4xf32>
      tpu.vector_store %arg3[%c0_39, %47, %c1_40, %c0_41, %c4_42], %50 {strides = array<i32>} : memref<2x2x4x4x16xf32, #tpu.memory_space<vmem>>, vector<2x1x1x4x4xf32>,
      %c2_i32_43 = arith.constant 2 : i32
      %51 = arith.addi %2, %c2_i32_43 : i32
      %c0_44 = arith.constant 0 : index
      %c0_45 = arith.constant 0 : index
      %52 = arith.index_cast %51 : i32 to index
      %c4_46 = arith.constant 4 : index
      %53 = vector.load %arg2[%c0_44, %c0_45, %52, %c4_46] : memref<2x4x8x16xf32, #tpu.memory_space<vmem>>, vector<2x4x1x4xf32>
      %54 = vector.shape_cast %53 : vector<2x4x1x4xf32> to vector<2x4x4xf32>
      %c0_47 = arith.constant 0 : index
      %55 = arith.index_cast %arg4 : i32 to index
      %c1_48 = arith.constant 1 : index
      %c0_49 = arith.constant 0 : index
      %c8_50 = arith.constant 8 : index
      %56 = vector.load %arg3[%c0_47, %55, %c1_48, %c0_49, %c8_50] : memref<2x2x4x4x16xf32, #tpu.memory_space<vmem>>, vector<2x1x1x4x4xf32>
      %57 = vector.shape_cast %56 : vector<2x1x1x4x4xf32> to vector<2x4x4xf32>
      %58 = vector.shape_cast %54 : vector<2x4x4xf32> to vector<2x1x1x4x4xf32>
      tpu.vector_store %arg3[%c0_47, %55, %c1_48, %c0_49, %c8_50], %58 {strides = array<i32>} : memref<2x2x4x4x16xf32, #tpu.memory_space<vmem>>, vector<2x1x1x4x4xf32>,
      %c3_i32_51 = arith.constant 3 : i32
      %59 = arith.addi %2, %c3_i32_51 : i32
      %c0_52 = arith.constant 0 : index
      %c0_53 = arith.constant 0 : index
      %60 = arith.index_cast %59 : i32 to index
      %c4_54 = arith.constant 4 : index
      %61 = vector.load %arg2[%c0_52, %c0_53, %60, %c4_54] : memref<2x4x8x16xf32, #tpu.memory_space<vmem>>, vector<2x4x1x4xf32>
      %62 = vector.shape_cast %61 : vector<2x4x1x4xf32> to vector<2x4x4xf32>
      %c0_55 = arith.constant 0 : index
      %63 = arith.index_cast %arg4 : i32 to index
      %c1_56 = arith.constant 1 : index
      %c0_57 = arith.constant 0 : index
      %c12_58 = arith.constant 12 : index
      %64 = vector.load %arg3[%c0_55, %63, %c1_56, %c0_57, %c12_58] : memref<2x2x4x4x16xf32, #tpu.memory_space<vmem>>, vector<2x1x1x4x4xf32>
      %65 = vector.shape_cast %64 : vector<2x1x1x4x4xf32> to vector<2x4x4xf32>
      %66 = vector.shape_cast %62 : vector<2x4x4xf32> to vector<2x1x1x4x4xf32>
      tpu.vector_store %arg3[%c0_55, %63, %c1_56, %c0_57, %c12_58], %66 {strides = array<i32>} : memref<2x2x4x4x16xf32, #tpu.memory_space<vmem>>, vector<2x1x1x4x4xf32>,
      %c0_i32_59 = arith.constant 0 : i32
      %67 = arith.addi %2, %c0_i32_59 : i32
      %c0_60 = arith.constant 0 : index
      %c0_61 = arith.constant 0 : index
      %68 = arith.index_cast %67 : i32 to index
      %c8_62 = arith.constant 8 : index
      %69 = vector.load %arg2[%c0_60, %c0_61, %68, %c8_62] : memref<2x4x8x16xf32, #tpu.memory_space<vmem>>, vector<2x4x1x4xf32>
      %70 = vector.shape_cast %69 : vector<2x4x1x4xf32> to vector<2x4x4xf32>
      %c0_63 = arith.constant 0 : index
      %71 = arith.index_cast %arg4 : i32 to index
      %c2 = arith.constant 2 : index
      %c0_64 = arith.constant 0 : index
      %c0_65 = arith.constant 0 : index
      %72 = vector.load %arg3[%c0_63, %71, %c2, %c0_64, %c0_65] : memref<2x2x4x4x16xf32, #tpu.memory_space<vmem>>, vector<2x1x1x4x4xf32>
      %73 = vector.shape_cast %72 : vector<2x1x1x4x4xf32> to vector<2x4x4xf32>
      %74 = vector.shape_cast %70 : vector<2x4x4xf32> to vector<2x1x1x4x4xf32>
      tpu.vector_store %arg3[%c0_63, %71, %c2, %c0_64, %c0_65], %74 {strides = array<i32>} : memref<2x2x4x4x16xf32, #tpu.memory_space<vmem>>, vector<2x1x1x4x4xf32>,
      %c1_i32_66 = arith.constant 1 : i32
      %75 = arith.addi %2, %c1_i32_66 : i32
      %c0_67 = arith.constant 0 : index
      %c0_68 = arith.constant 0 : index
      %76 = arith.index_cast %75 : i32 to index
      %c8_69 = arith.constant 8 : index
      %77 = vector.load %arg2[%c0_67, %c0_68, %76, %c8_69] : memref<2x4x8x16xf32, #tpu.memory_space<vmem>>, vector<2x4x1x4xf32>
      %78 = vector.shape_cast %77 : vector<2x4x1x4xf32> to vector<2x4x4xf32>
      %c0_70 = arith.constant 0 : index
      %79 = arith.index_cast %arg4 : i32 to index
      %c2_71 = arith.constant 2 : index
      %c0_72 = arith.constant 0 : index
      %c4_73 = arith.constant 4 : index
      %80 = vector.load %arg3[%c0_70, %79, %c2_71, %c0_72, %c4_73] : memref<2x2x4x4x16xf32, #tpu.memory_space<vmem>>, vector<2x1x1x4x4xf32>
      %81 = vector.shape_cast %80 : vector<2x1x1x4x4xf32> to vector<2x4x4xf32>
      %82 = vector.shape_cast %78 : vector<2x4x4xf32> to vector<2x1x1x4x4xf32>
      tpu.vector_store %arg3[%c0_70, %79, %c2_71, %c0_72, %c4_73], %82 {strides = array<i32>} : memref<2x2x4x4x16xf32, #tpu.memory_space<vmem>>, vector<2x1x1x4x4xf32>,
      %c2_i32_74 = arith.constant 2 : i32
      %83 = arith.addi %2, %c2_i32_74 : i32
      %c0_75 = arith.constant 0 : index
      %c0_76 = arith.constant 0 : index
      %84 = arith.index_cast %83 : i32 to index
      %c8_77 = arith.constant 8 : index
      %85 = vector.load %arg2[%c0_75, %c0_76, %84, %c8_77] : memref<2x4x8x16xf32, #tpu.memory_space<vmem>>, vector<2x4x1x4xf32>
      %86 = vector.shape_cast %85 : vector<2x4x1x4xf32> to vector<2x4x4xf32>
      %c0_78 = arith.constant 0 : index
      %87 = arith.index_cast %arg4 : i32 to index
      %c2_79 = arith.constant 2 : index
      %c0_80 = arith.constant 0 : index
      %c8_81 = arith.constant 8 : index
      %88 = vector.load %arg3[%c0_78, %87, %c2_79, %c0_80, %c8_81] : memref<2x2x4x4x16xf32, #tpu.memory_space<vmem>>, vector<2x1x1x4x4xf32>
      %89 = vector.shape_cast %88 : vector<2x1x1x4x4xf32> to vector<2x4x4xf32>
      %90 = vector.shape_cast %86 : vector<2x4x4xf32> to vector<2x1x1x4x4xf32>
      tpu.vector_store %arg3[%c0_78, %87, %c2_79, %c0_80, %c8_81], %90 {strides = array<i32>} : memref<2x2x4x4x16xf32, #tpu.memory_space<vmem>>, vector<2x1x1x4x4xf32>,
      %c3_i32_82 = arith.constant 3 : i32
      %91 = arith.addi %2, %c3_i32_82 : i32
      %c0_83 = arith.constant 0 : index
      %c0_84 = arith.constant 0 : index
      %92 = arith.index_cast %91 : i32 to index
      %c8_85 = arith.constant 8 : index
      %93 = vector.load %arg2[%c0_83, %c0_84, %92, %c8_85] : memref<2x4x8x16xf32, #tpu.memory_space<vmem>>, vector<2x4x1x4xf32>
      %94 = vector.shape_cast %93 : vector<2x4x1x4xf32> to vector<2x4x4xf32>
      %c0_86 = arith.constant 0 : index
      %95 = arith.index_cast %arg4 : i32 to index
      %c2_87 = arith.constant 2 : index
      %c0_88 = arith.constant 0 : index
      %c12_89 = arith.constant 12 : index
      %96 = vector.load %arg3[%c0_86, %95, %c2_87, %c0_88, %c12_89] : memref<2x2x4x4x16xf32, #tpu.memory_space<vmem>>, vector<2x1x1x4x4xf32>
      %97 = vector.shape_cast %96 : vector<2x1x1x4x4xf32> to vector<2x4x4xf32>
      %98 = vector.shape_cast %94 : vector<2x4x4xf32> to vector<2x1x1x4x4xf32>
      tpu.vector_store %arg3[%c0_86, %95, %c2_87, %c0_88, %c12_89], %98 {strides = array<i32>} : memref<2x2x4x4x16xf32, #tpu.memory_space<vmem>>, vector<2x1x1x4x4xf32>,
      %c0_i32_90 = arith.constant 0 : i32
      %99 = arith.addi %2, %c0_i32_90 : i32
      %c0_91 = arith.constant 0 : index
      %c0_92 = arith.constant 0 : index
      %100 = arith.index_cast %99 : i32 to index
      %c12_93 = arith.constant 12 : index
      %101 = vector.load %arg2[%c0_91, %c0_92, %100, %c12_93] : memref<2x4x8x16xf32, #tpu.memory_space<vmem>>, vector<2x4x1x4xf32>
      %102 = vector.shape_cast %101 : vector<2x4x1x4xf32> to vector<2x4x4xf32>
      %c0_94 = arith.constant 0 : index
      %103 = arith.index_cast %arg4 : i32 to index
      %c3 = arith.constant 3 : index
      %c0_95 = arith.constant 0 : index
      %c0_96 = arith.constant 0 : index
      %104 = vector.load %arg3[%c0_94, %103, %c3, %c0_95, %c0_96] : memref<2x2x4x4x16xf32, #tpu.memory_space<vmem>>, vector<2x1x1x4x4xf32>
      %105 = vector.shape_cast %104 : vector<2x1x1x4x4xf32> to vector<2x4x4xf32>
      %106 = vector.shape_cast %102 : vector<2x4x4xf32> to vector<2x1x1x4x4xf32>
      tpu.vector_store %arg3[%c0_94, %103, %c3, %c0_95, %c0_96], %106 {strides = array<i32>} : memref<2x2x4x4x16xf32, #tpu.memory_space<vmem>>, vector<2x1x1x4x4xf32>,
      %c1_i32_97 = arith.constant 1 : i32
      %107 = arith.addi %2, %c1_i32_97 : i32
      %c0_98 = arith.constant 0 : index
      %c0_99 = arith.constant 0 : index
      %108 = arith.index_cast %107 : i32 to index
      %c12_100 = arith.constant 12 : index
      %109 = vector.load %arg2[%c0_98, %c0_99, %108, %c12_100] : memref<2x4x8x16xf32, #tpu.memory_space<vmem>>, vector<2x4x1x4xf32>
      %110 = vector.shape_cast %109 : vector<2x4x1x4xf32> to vector<2x4x4xf32>
      %c0_101 = arith.constant 0 : index
      %111 = arith.index_cast %arg4 : i32 to index
      %c3_102 = arith.constant 3 : index
      %c0_103 = arith.constant 0 : index
      %c4_104 = arith.constant 4 : index
      %112 = vector.load %arg3[%c0_101, %111, %c3_102, %c0_103, %c4_104] : memref<2x2x4x4x16xf32, #tpu.memory_space<vmem>>, vector<2x1x1x4x4xf32>
      %113 = vector.shape_cast %112 : vector<2x1x1x4x4xf32> to vector<2x4x4xf32>
      %114 = vector.shape_cast %110 : vector<2x4x4xf32> to vector<2x1x1x4x4xf32>
      tpu.vector_store %arg3[%c0_101, %111, %c3_102, %c0_103, %c4_104], %114 {strides = array<i32>} : memref<2x2x4x4x16xf32, #tpu.memory_space<vmem>>, vector<2x1x1x4x4xf32>,
      %c2_i32_105 = arith.constant 2 : i32
      %115 = arith.addi %2, %c2_i32_105 : i32
      %c0_106 = arith.constant 0 : index
      %c0_107 = arith.constant 0 : index
      %116 = arith.index_cast %115 : i32 to index
      %c12_108 = arith.constant 12 : index
      %117 = vector.load %arg2[%c0_106, %c0_107, %116, %c12_108] : memref<2x4x8x16xf32, #tpu.memory_space<vmem>>, vector<2x4x1x4xf32>
      %118 = vector.shape_cast %117 : vector<2x4x1x4xf32> to vector<2x4x4xf32>
      %c0_109 = arith.constant 0 : index
      %119 = arith.index_cast %arg4 : i32 to index
      %c3_110 = arith.constant 3 : index
      %c0_111 = arith.constant 0 : index
      %c8_112 = arith.constant 8 : index
      %120 = vector.load %arg3[%c0_109, %119, %c3_110, %c0_111, %c8_112] : memref<2x2x4x4x16xf32, #tpu.memory_space<vmem>>, vector<2x1x1x4x4xf32>
      %121 = vector.shape_cast %120 : vector<2x1x1x4x4xf32> to vector<2x4x4xf32>
      %122 = vector.shape_cast %118 : vector<2x4x4xf32> to vector<2x1x1x4x4xf32>
      tpu.vector_store %arg3[%c0_109, %119, %c3_110, %c0_111, %c8_112], %122 {strides = array<i32>} : memref<2x2x4x4x16xf32, #tpu.memory_space<vmem>>, vector<2x1x1x4x4xf32>,
      %c3_i32_113 = arith.constant 3 : i32
      %123 = arith.addi %2, %c3_i32_113 : i32
      %c0_114 = arith.constant 0 : index
      %c0_115 = arith.constant 0 : index
      %124 = arith.index_cast %123 : i32 to index
      %c12_116 = arith.constant 12 : index
      %125 = vector.load %arg2[%c0_114, %c0_115, %124, %c12_116] : memref<2x4x8x16xf32, #tpu.memory_space<vmem>>, vector<2x4x1x4xf32>
      %126 = vector.shape_cast %125 : vector<2x4x1x4xf32> to vector<2x4x4xf32>
      %c0_117 = arith.constant 0 : index
      %127 = arith.index_cast %arg4 : i32 to index
      %c3_118 = arith.constant 3 : index
      %c0_119 = arith.constant 0 : index
      %c12_120 = arith.constant 12 : index
      %128 = vector.load %arg3[%c0_117, %127, %c3_118, %c0_119, %c12_120] : memref<2x2x4x4x16xf32, #tpu.memory_space<vmem>>, vector<2x1x1x4x4xf32>
      %129 = vector.shape_cast %128 : vector<2x1x1x4x4xf32> to vector<2x4x4xf32>
      %130 = vector.shape_cast %126 : vector<2x4x4xf32> to vector<2x1x1x4x4xf32>
      tpu.vector_store %arg3[%c0_117, %127, %c3_118, %c0_119, %c12_120], %130 {strides = array<i32>} : memref<2x2x4x4x16xf32, #tpu.memory_space<vmem>>, vector<2x1x1x4x4xf32>,
    }
    %c2_i32_0 = arith.constant 2 : i32
    return
  }
  func.func @transform_0(%arg0: i32, %arg1: i32) -> (i32, i32, i32, i32) {
    %c0_i32 = arith.constant 0 : i32
    %c0_i32_0 = arith.constant 0 : i32
    %c0_i32_1 = arith.constant 0 : i32
    return %c0_i32, %arg1, %arg0, %c0_i32_0 : i32, i32, i32, i32
  }
  func.func @transform_1(%arg0: i32, %arg1: i32) -> (i32, i32, i32, i32, i32) {
    %c0_i32 = arith.constant 0 : i32
    %c0_i32_0 = arith.constant 0 : i32
    %c0_i32_1 = arith.constant 0 : i32
    %c0_i32_2 = arith.constant 0 : i32
    return %c0_i32, %arg0, %c0_i32_0, %arg1, %c0_i32_1 : i32, i32, i32, i32, i32
  }
}

</mosaic_0001>

<llo_original>
// kernel: tpu_custom_call.1
$region0: #{tpu_custom_call.1}
  #allocation0 [shape = 'u32[]', space=smem, size = 0x4, offset = 0x4, fixed_abs, tag = 'smem constant byte address 0x4 - core index']
  #allocation1 [shape = 'u32[144,128]{1,0:T(1,128)}', space=vmem, size = 0x12000, scoped, tag = 'internal scratch']
  #allocation6 [shape = 's32[]', space=sflag, size = 0x4, offset = 0, fixed_abs, tag = 'sflag constant byte address 0x0 - dummy sync flag']
  %s0 = inlined_call_operand.hbm [shape: f32[2,4,16,16], index: 0, kind: input, shape index: {}]
  %s1 = inlined_call_operand.hbm [shape: f32[2,4,4,4,16], index: 1, kind: output, shape index: {}]
  %s2 = sld [smem:[#allocation0]]
  $region48: #{tpu_custom_call.1} parent=0
    _
  %s4 = ssub.s32 1, %s2
  %s5 = scalar_select 0, %s4, %s2
  $region1: #{tpu_custom_call.1} parent=0
    #allocation2 [shape = 'u8[65536]{0}', space=vmem, size = 0x10000, scoped, tag = 'input window, operand 0']
    #allocation3 [shape = 's32[2]{0}', space=sflag, size = 0x8, scoped, tag = 'scoped memory for tpu_custom_call.1']
    #allocation4 [shape = 's32[2]{0}', space=sflag, size = 0x8, scoped, tag = 'scoped memory for tpu_custom_call.1']
    #allocation5 [shape = 'u8[65536]{0}', space=vmem, size = 0x10000, scoped, tag = 'output window, operand 0']
    %6 = vsyncpa [#allocation3], 0
    %s7 = scalar_lea.sflag [#allocation3], 1
    %8 = vsyncpa %s7, 0
    %9 = vsyncpa [#allocation4], 0
    %s10 = scalar_lea.sflag [#allocation4], 1
    %11 = vsyncpa %s10, 0
    loop: start=0, step=1, limit=4
    $region2: #{tpu_custom_call.1} parent=1 // loop_pre_header
      _
    $region3: #{tpu_custom_call.1} parent=1 // loop_header
      %s13 = sphi 0, %s17
      %p14 = scmp.ge.s32.totalorder %s13, 4
      %s20 = sphi 0, %s32
      %s21 = sphi 0, %s28
      %s22 = sphi 0, %s20
      %s23 = sphi 0, %s21
      %s24 = sphi 0, %s22
      %s25 = sphi 0, %s23
      %s37 = sphi 0, %s39
      %s40 = sphi 0, %s37
      %s41 = sphi 0, %s40
      %s57 = sphi 0, %s41
      %s65 = sphi 0, %s67
      %s68 = sphi 0, %s65
      %s69 = sphi 0, %s68
      %s85 = sphi 0, %s69
    $region4: #{tpu_custom_call.1} parent=1 // loop_header_branch
      %16 = sbr.rel (%p14) target = $region8
    $region5: #{tpu_custom_call.1} parent=1 // loop_body
      %s18 = ssub.s32 %s13, 1
      %s19 = ssub.s32 %s13, 2
      %s26 = sadd.s32 1, %s21
      %p27 = scmp.ge.s32.totalorder %s26, 1
      %s28 = scalar_select %p27, 0, %s26
      %s29 = sadd.s32 1, %s20
      %s30 = scalar_select %p27, %s29, %s20
      %p31 = scmp.ge.s32.totalorder %s30, 2
      %s32 = scalar_select %p31, 0, %s30
      %s33 = ssub.s32 %s21, %s28
      %s34 = ssub.s32 %s20, %s32
      %s35 = sor.u32 %s33, %s34
      %p36 = scmp.eq.s32.totalorder %s35, 0
      %s38 = sadd.s32 %s37, 1
      %s39 = scalar_select %p36, %s37, %s38
      %p42 = pneg %p36
      %p43 = scmp.eq.s32.totalorder %s13, 1
      %p44 = por %p42, %p43
      %p45 = scmp.ne.s32.totalorder %s37, %s40
      %p46 = scmp.eq.s32.totalorder %s13, 0
      %p47 = por %p45, %p46
      %p48 = scmp.ne.s32.totalorder %s37, %s40
      %p49 = scmp.eq.s32.totalorder %s18, 1
      %p50 = por %p48, %p49
      %p51 = scmp.ne.s32.totalorder %s40, %s41
      %p52 = scmp.eq.s32.totalorder %s18, 0
      %p53 = por %p51, %p52
      %p54 = scmp.ne.s32.totalorder %s40, %s41
      %p55 = scmp.eq.s32.totalorder %s19, 1
      %p56 = por %p54, %p55
      %p58 = scmp.ne.s32.totalorder %s41, %s57
      %p59 = scmp.eq.s32.totalorder %s19, 0
      %p60 = por %p58, %p59
      %s61 = ssub.s32 %s20, %s32
      %s62 = ssub.s32 %s21, %s28
      %s63 = sor.u32 %s61, %s62
      %p64 = scmp.eq.s32.totalorder %s63, 0
      %s66 = sadd.s32 %s65, 1
      %s67 = scalar_select %p64, %s65, %s66
      %p70 = pneg %p64
      %p71 = scmp.eq.s32.totalorder %s13, 1
      %p72 = por %p70, %p71
      %p73 = scmp.ne.s32.totalorder %s65, %s68
      %p74 = scmp.eq.s32.totalorder %s13, 0
      %p75 = por %p73, %p74
      %p76 = scmp.ne.s32.totalorder %s65, %s68
      %p77 = scmp.eq.s32.totalorder %s18, 1
      %p78 = por %p76, %p77
      %p79 = scmp.ne.s32.totalorder %s68, %s69
      %p80 = scmp.eq.s32.totalorder %s18, 0
      %p81 = por %p79, %p80
      %p82 = scmp.ne.s32.totalorder %s68, %s69
      %p83 = scmp.eq.s32.totalorder %s19, 1
      %p84 = por %p82, %p83
      %p86 = scmp.ne.s32.totalorder %s69, %s85
      %p87 = scmp.eq.s32.totalorder %s19, 0
      %p88 = por %p86, %p87
      %p89 = scmp.le.s32.totalorder 1, %s13
      %p90 = scmp.lt.s32.totalorder %s13, 3
      %p91 = pnand %p89, %p90
      %p92 = pneg %p91
      // Predicated region
      $region9: #{tpu_custom_call.1} parent=5 // pred_check
        _
      $region10: #{tpu_custom_call.1} parent=5 // pred_check_branch
        %94 = sbr.rel (%p91) target = $region12
      $region11: #{tpu_custom_call.1} parent=5 // pred_region
        %s95 = ssub.s32 %s13, 1
      $region12: #{tpu_custom_call.1} parent=5 // pred_fallthru
        _
      %p96 = scmp.lt.s32.totalorder %s13, 2
      // Predicated region
      $region13: #{tpu_custom_call.1} parent=5 // pred_check
        %p97 = pneg %p96
      $region14: #{tpu_custom_call.1} parent=5 // pred_check_branch
        %99 = sbr.rel (%p97) target = $region16
      $region15: #{tpu_custom_call.1} parent=5 // pred_region
        // Predicated region
        $region17: #{tpu_custom_call.1} parent=15 // pred_check
          %p100 = pneg %p47
        $region18: #{tpu_custom_call.1} parent=15 // pred_check_branch
          %102 = sbr.rel (%p100) target = $region20
        $region19: #{tpu_custom_call.1} parent=15 // pred_region
          %s103 = sand.u32 %s37, 1
          %s104 = scalar_lea.sflag [#allocation3], %s103
          %s105 = sand.u32 %s37, 1
          %s106 = smul.addr %s105, 64
          %s107 = scalar_lea.vmem [#allocation2], %s106
          %s108 = smul.u32 4, %s21
          %s110 = ssub.s32 1024, 1024
          %111 = vsyncadd %s104, %s110
          %s112 = smul.addr %s108, 2
          %s113 = sadd.s32 %s20, %s112
          %s114 = smul.addr %s113, 128
          %s115 = scalar_lea.hbm %s0, %s114
          %s116 = sshll.u32 %s107, 4
          %s117 = int_to_ptr.vmem [resolvable:$true] %s116
          %122 = dma.hbm_to_vmem [thread:$0]  %s115, 1024, %s117, %s104, 256, 128, 8
        $region20: #{tpu_custom_call.1} parent=15 // pred_fallthru
          _
      $region16: #{tpu_custom_call.1} parent=5 // pred_fallthru
        _
      %p123 = scmp.le.s32.totalorder 1, %s13
      %p124 = scmp.lt.s32.totalorder %s13, 3
      %p125 = pnand %p123, %p124
      %p126 = pneg %p125
      // Predicated region
      $region21: #{tpu_custom_call.1} parent=5 // pred_check
        _
      $region22: #{tpu_custom_call.1} parent=5 // pred_check_branch
        %128 = sbr.rel (%p125) target = $region24
      $region23: #{tpu_custom_call.1} parent=5 // pred_region
        %s129 = ssub.s32 %s13, 1
        %s130 = sand.u32 %s40, 1
        %s131 = scalar_lea.sflag [#allocation3], %s130
        %s132 = sand.u32 %s40, 1
        %s133 = smul.addr %s132, 64
        %s134 = scalar_lea.vmem [#allocation2], %s133
        // Predicated region
        $region25: #{tpu_custom_call.1} parent=23 // pred_check
          %p135 = pneg %p53
        $region26: #{tpu_custom_call.1} parent=23 // pred_check_branch
          %137 = sbr.rel (%p135) target = $region28
        $region27: #{tpu_custom_call.1} parent=23 // pred_region
          %138 = dma.done %s131, 1024
        $region28: #{tpu_custom_call.1} parent=23 // pred_fallthru
          _
        %s139 = sand.u32 %s40, 1
        %s140 = scalar_lea.sflag [#allocation3], %s139
        %s141 = sand.u32 %s40, 1
        %s142 = smul.addr %s141, 64
        %s143 = scalar_lea.vmem [#allocation2], %s142
        %p144 = pneg %p53
        %p145 = pneg %p50
        %p146 = pneg %p81
        %p147 = pneg %p78
        %s148 = sand.u32 %s68, 1
        %s149 = scalar_lea.sflag [#allocation4], %s148
        %s150 = sand.u32 %s68, 1
        %s151 = smul.addr %s150, 64
        %s152 = scalar_lea.vmem [#allocation5], %s151
        %s153 = smul.u32 4, %s23
        %s154 = smul.u32 2, %s22
        loop: start=0, step=1, limit=2
        $region29: #{tpu_custom_call.1} parent=23 // loop_pre_header
          _
        $region30: #{tpu_custom_call.1} parent=23 // loop_header
          %s156 = sphi 0, %s160
          %p157 = scmp.ge.s32.totalorder %s156, 2
        $region31: #{tpu_custom_call.1} parent=23 // loop_header_branch
          %159 = sbr.rel (%p157) target = $region35
        $region32: #{tpu_custom_call.1} parent=23 // loop_body
          %s161 = smul.u32 %s156, 4
          %s162 = scalar_lea.vmem %s134, %s161 [#allocation2]
          %v163 = vld [vmem:[%s162] sm:$0x1]
          %v164 = vld [vmem:[%s162 + $0x8] sm:$0x1]
          %v165 = vld [vmem:[%s162 + $0x10] sm:$0x1]
          %v166 = vld [vmem:[%s162 + $0x18] sm:$0x1]
          %v167 = vld [vmem:[%s162 + $0x20] sm:$0x1]
          %v168 = vld [vmem:[%s162 + $0x28] sm:$0x1]
          %v169 = vld [vmem:[%s162 + $0x30] sm:$0x1]
          %v170 = vld [vmem:[%s162 + $0x38] sm:$0x1]
          %s171 = sadd.s32 %s161, 1
          %s172 = scalar_lea.vmem %s134, %s171 [#allocation2]
          %v173 = vld [vmem:[%s172] sm:$0x1]
          %v174 = vld [vmem:[%s172 + $0x8] sm:$0x1]
          %v175 = vld [vmem:[%s172 + $0x10] sm:$0x1]
          %v176 = vld [vmem:[%s172 + $0x18] sm:$0x1]
          %v177 = vld [vmem:[%s172 + $0x20] sm:$0x1]
          %v178 = vld [vmem:[%s172 + $0x28] sm:$0x1]
          %v179 = vld [vmem:[%s172 + $0x30] sm:$0x1]
          %v180 = vld [vmem:[%s172 + $0x38] sm:$0x1]
          %s181 = sadd.s32 %s161, 2
          %s182 = scalar_lea.vmem %s134, %s181 [#allocation2]
          %v183 = vld [vmem:[%s182] sm:$0x1]
          %v184 = vld [vmem:[%s182 + $0x8] sm:$0x1]
          %v185 = vld [vmem:[%s182 + $0x10] sm:$0x1]
          %v186 = vld [vmem:[%s182 + $0x18] sm:$0x1]
          %v187 = vld [vmem:[%s182 + $0x20] sm:$0x1]
          %v188 = vld [vmem:[%s182 + $0x28] sm:$0x1]
          %v189 = vld [vmem:[%s182 + $0x30] sm:$0x1]
          %v190 = vld [vmem:[%s182 + $0x38] sm:$0x1]
          %s191 = sadd.s32 %s161, 3
          %s192 = scalar_lea.vmem %s134, %s191 [#allocation2]
          %v193 = vld [vmem:[%s192] sm:$0x1]
          %v194 = vld [vmem:[%s192 + $0x8] sm:$0x1]
          %v195 = vld [vmem:[%s192 + $0x10] sm:$0x1]
          %v196 = vld [vmem:[%s192 + $0x18] sm:$0x1]
          %v197 = vld [vmem:[%s192 + $0x20] sm:$0x1]
          %v198 = vld [vmem:[%s192 + $0x28] sm:$0x1]
          %v199 = vld [vmem:[%s192 + $0x30] sm:$0x1]
          %v200 = vld [vmem:[%s192 + $0x38] sm:$0x1]
          %v209 = vrot.slane %v164, 7
          %vm210 = vcmask 1041409
          %v211 = vsel %vm210, %v209, %v163
          %v212 = vrot.slane %v165, 6
          %vm213 = vcmask 1042434
          %v214 = vsel %vm213, %v212, %v211
          %v215 = vrot.slane %v166, 5
          %vm216 = vcmask 1043459
          %v217 = vsel %vm216, %v215, %v214
          %v218 = vrot.slane %v168, 7
          %v219 = vsel %vm210, %v218, %v167
          %v220 = vrot.slane %v169, 6
          %v221 = vsel %vm213, %v220, %v219
          %v222 = vrot.slane %v170, 5
          %v223 = vsel %vm216, %v222, %v221
          %v234 = vrot.slane %v174, 7
          %v235 = vsel %vm210, %v234, %v173
          %v236 = vrot.slane %v175, 6
          %v237 = vsel %vm213, %v236, %v235
          %v238 = vrot.slane %v176, 5
          %v239 = vsel %vm216, %v238, %v237
          %v240 = vrot.slane %v178, 7
          %v241 = vsel %vm210, %v240, %v177
          %v242 = vrot.slane %v179, 6
          %v243 = vsel %vm213, %v242, %v241
          %v244 = vrot.slane %v180, 5
          %v245 = vsel %vm216, %v244, %v243
          %246 = vrot.lane.b32.xlu0 %v239, 4
          %v247 = vpop.permute.xlu0 %246
          %248 = vrot.lane.b32.xlu0 %v245, 4
          %v249 = vpop.permute.xlu0 %248
          %v260 = vrot.slane %v184, 7
          %v261 = vsel %vm210, %v260, %v183
          %v262 = vrot.slane %v185, 6
          %v263 = vsel %vm213, %v262, %v261
          %v264 = vrot.slane %v186, 5
          %v265 = vsel %vm216, %v264, %v263
          %v266 = vrot.slane %v188, 7
          %v267 = vsel %vm210, %v266, %v187
          %v268 = vrot.slane %v189, 6
          %v269 = vsel %vm213, %v268, %v267
          %v270 = vrot.slane %v190, 5
          %v271 = vsel %vm216, %v270, %v269
          %272 = vrot.lane.b32.xlu0 %v265, 8
          %v273 = vpop.permute.xlu0 %272
          %274 = vrot.lane.b32.xlu0 %v271, 8
          %v275 = vpop.permute.xlu0 %274
          %v286 = vrot.slane %v194, 7
          %v287 = vsel %vm210, %v286, %v193
          %v288 = vrot.slane %v195, 6
          %v289 = vsel %vm213, %v288, %v287
          %v290 = vrot.slane %v196, 5
          %v291 = vsel %vm216, %v290, %v289
          %v292 = vrot.slane %v198, 7
          %v293 = vsel %vm210, %v292, %v197
          %v294 = vrot.slane %v199, 6
          %v295 = vsel %vm213, %v294, %v293
          %v296 = vrot.slane %v200, 5
          %v297 = vsel %vm216, %v296, %v295
          %298 = vrot.lane.b32.xlu0 %v291, 12
          %v299 = vpop.permute.xlu0 %298
          %300 = vrot.lane.b32.xlu0 %v297, 12
          %v301 = vpop.permute.xlu0 %300
          %vm304 = vcmask 31744
          %v305 = vsel %vm304, %v217, %v247
          %v306 = vsel %vm304, %v223, %v249
          %vm307 = vcmask 64512
          %v308 = vsel %vm307, %v305, %v273
          %v309 = vsel %vm307, %v306, %v275
          %vm310 = vcmask 97280
          %v311 = vsel %vm310, %v308, %v299
          %v312 = vsel %vm310, %v309, %v301
          %s313 = smul.u32 %s156, 16
          %s314 = scalar_lea.vmem %s152, %s313 [#allocation5]
          %vm315 = vcmask 125952
          %316 = vst.msk [vmem:[%s314] sm:$0xf] %vm315, %v311
          %317 = vst.msk [vmem:[%s314 + $0x20] sm:$0xf] %vm315, %v312
          %v318 = vld [vmem:[%s162] sm:$0x1]
          %v319 = vld [vmem:[%s162 + $0x8] sm:$0x1]
          %v320 = vld [vmem:[%s162 + $0x10] sm:$0x1]
          %v321 = vld [vmem:[%s162 + $0x18] sm:$0x1]
          %v322 = vld [vmem:[%s162 + $0x20] sm:$0x1]
          %v323 = vld [vmem:[%s162 + $0x28] sm:$0x1]
          %v324 = vld [vmem:[%s162 + $0x30] sm:$0x1]
          %v325 = vld [vmem:[%s162 + $0x38] sm:$0x1]
          %v326 = vld [vmem:[%s172] sm:$0x1]
          %v327 = vld [vmem:[%s172 + $0x8] sm:$0x1]
          %v328 = vld [vmem:[%s172 + $0x10] sm:$0x1]
          %v329 = vld [vmem:[%s172 + $0x18] sm:$0x1]
          %v330 = vld [vmem:[%s172 + $0x20] sm:$0x1]
          %v331 = vld [vmem:[%s172 + $0x28] sm:$0x1]
          %v332 = vld [vmem:[%s172 + $0x30] sm:$0x1]
          %v333 = vld [vmem:[%s172 + $0x38] sm:$0x1]
          %v334 = vld [vmem:[%s182] sm:$0x1]
          %v335 = vld [vmem:[%s182 + $0x8] sm:$0x1]
          %v336 = vld [vmem:[%s182 + $0x10] sm:$0x1]
          %v337 = vld [vmem:[%s182 + $0x18] sm:$0x1]
          %v338 = vld [vmem:[%s182 + $0x20] sm:$0x1]
          %v339 = vld [vmem:[%s182 + $0x28] sm:$0x1]
          %v340 = vld [vmem:[%s182 + $0x30] sm:$0x1]
          %v341 = vld [vmem:[%s182 + $0x38] sm:$0x1]
          %v342 = vld [vmem:[%s192] sm:$0x1]
          %v343 = vld [vmem:[%s192 + $0x8] sm:$0x1]
          %v344 = vld [vmem:[%s192 + $0x10] sm:$0x1]
          %v345 = vld [vmem:[%s192 + $0x18] sm:$0x1]
          %v346 = vld [vmem:[%s192 + $0x20] sm:$0x1]
          %v347 = vld [vmem:[%s192 + $0x28] sm:$0x1]
          %v348 = vld [vmem:[%s192 + $0x30] sm:$0x1]
          %v349 = vld [vmem:[%s192 + $0x38] sm:$0x1]
          %v358 = vrot.slane %v319, 7
          %v359 = vsel %vm210, %v358, %v318
          %v360 = vrot.slane %v320, 6
          %v361 = vsel %vm213, %v360, %v359
          %v362 = vrot.slane %v321, 5
          %v363 = vsel %vm216, %v362, %v361
          %v364 = vrot.slane %v323, 7
          %v365 = vsel %vm210, %v364, %v322
          %v366 = vrot.slane %v324, 6
          %v367 = vsel %vm213, %v366, %v365
          %v368 = vrot.slane %v325, 5
          %v369 = vsel %vm216, %v368, %v367
          %370 = vrot.lane.b32.xlu0 %v363, 124
          %v371 = vpop.permute.xlu0 %370
          %372 = vrot.lane.b32.xlu0 %v369, 124
          %v373 = vpop.permute.xlu0 %372
          %v384 = vrot.slane %v327, 7
          %v385 = vsel %vm210, %v384, %v326
          %v386 = vrot.slane %v328, 6
          %v387 = vsel %vm213, %v386, %v385
          %v388 = vrot.slane %v329, 5
          %v389 = vsel %vm216, %v388, %v387
          %v390 = vrot.slane %v331, 7
          %v391 = vsel %vm210, %v390, %v330
          %v392 = vrot.slane %v332, 6
          %v393 = vsel %vm213, %v392, %v391
          %v394 = vrot.slane %v333, 5
          %v395 = vsel %vm216, %v394, %v393
          %v406 = vrot.slane %v335, 7
          %v407 = vsel %vm210, %v406, %v334
          %v408 = vrot.slane %v336, 6
          %v409 = vsel %vm213, %v408, %v407
          %v410 = vrot.slane %v337, 5
          %v411 = vsel %vm216, %v410, %v409
          %v412 = vrot.slane %v339, 7
          %v413 = vsel %vm210, %v412, %v338
          %v414 = vrot.slane %v340, 6
          %v415 = vsel %vm213, %v414, %v413
          %v416 = vrot.slane %v341, 5
          %v417 = vsel %vm216, %v416, %v415
          %418 = vrot.lane.b32.xlu0 %v411, 4
          %v419 = vpop.permute.xlu0 %418
          %420 = vrot.lane.b32.xlu0 %v417, 4
          %v421 = vpop.permute.xlu0 %420
          %v432 = vrot.slane %v343, 7
          %v433 = vsel %vm210, %v432, %v342
          %v434 = vrot.slane %v344, 6
          %v435 = vsel %vm213, %v434, %v433
          %v436 = vrot.slane %v345, 5
          %v437 = vsel %vm216, %v436, %v435
          %v438 = vrot.slane %v347, 7
          %v439 = vsel %vm210, %v438, %v346
          %v440 = vrot.slane %v348, 6
          %v441 = vsel %vm213, %v440, %v439
          %v442 = vrot.slane %v349, 5
          %v443 = vsel %vm216, %v442, %v441
          %444 = vrot.lane.b32.xlu0 %v437, 8
          %v445 = vpop.permute.xlu0 %444
          %446 = vrot.lane.b32.xlu0 %v443, 8
          %v447 = vpop.permute.xlu0 %446
          %v450 = vsel %vm304, %v371, %v389
          %v451 = vsel %vm304, %v373, %v395
          %v452 = vsel %vm307, %v450, %v419
          %v453 = vsel %vm307, %v451, %v421
          %v454 = vsel %vm310, %v452, %v445
          %v455 = vsel %vm310, %v453, %v447
          %s456 = sadd.s32 4, %s313
          %s457 = scalar_lea.vmem %s152, %s456 [#allocation5]
          %458 = vst.msk [vmem:[%s457] sm:$0xf] %vm315, %v454
          %459 = vst.msk [vmem:[%s457 + $0x20] sm:$0xf] %vm315, %v455
          %v460 = vld [vmem:[%s162] sm:$0x1]
          %v461 = vld [vmem:[%s162 + $0x8] sm:$0x1]
          %v462 = vld [vmem:[%s162 + $0x10] sm:$0x1]
          %v463 = vld [vmem:[%s162 + $0x18] sm:$0x1]
          %v464 = vld [vmem:[%s162 + $0x20] sm:$0x1]
          %v465 = vld [vmem:[%s162 + $0x28] sm:$0x1]
          %v466 = vld [vmem:[%s162 + $0x30] sm:$0x1]
          %v467 = vld [vmem:[%s162 + $0x38] sm:$0x1]
          %v468 = vld [vmem:[%s172] sm:$0x1]
          %v469 = vld [vmem:[%s172 + $0x8] sm:$0x1]
          %v470 = vld [vmem:[%s172 + $0x10] sm:$0x1]
          %v471 = vld [vmem:[%s172 + $0x18] sm:$0x1]
          %v472 = vld [vmem:[%s172 + $0x20] sm:$0x1]
          %v473 = vld [vmem:[%s172 + $0x28] sm:$0x1]
          %v474 = vld [vmem:[%s172 + $0x30] sm:$0x1]
          %v475 = vld [vmem:[%s172 + $0x38] sm:$0x1]
          %v476 = vld [vmem:[%s182] sm:$0x1]
          %v477 = vld [vmem:[%s182 + $0x8] sm:$0x1]
          %v478 = vld [vmem:[%s182 + $0x10] sm:$0x1]
          %v479 = vld [vmem:[%s182 + $0x18] sm:$0x1]
          %v480 = vld [vmem:[%s182 + $0x20] sm:$0x1]
          %v481 = vld [vmem:[%s182 + $0x28] sm:$0x1]
          %v482 = vld [vmem:[%s182 + $0x30] sm:$0x1]
          %v483 = vld [vmem:[%s182 + $0x38] sm:$0x1]
          %v484 = vld [vmem:[%s192] sm:$0x1]
          %v485 = vld [vmem:[%s192 + $0x8] sm:$0x1]
          %v486 = vld [vmem:[%s192 + $0x10] sm:$0x1]
          %v487 = vld [vmem:[%s192 + $0x18] sm:$0x1]
          %v488 = vld [vmem:[%s192 + $0x20] sm:$0x1]
          %v489 = vld [vmem:[%s192 + $0x28] sm:$0x1]
          %v490 = vld [vmem:[%s192 + $0x30] sm:$0x1]
          %v491 = vld [vmem:[%s192 + $0x38] sm:$0x1]
          %v500 = vrot.slane %v461, 7
          %v501 = vsel %vm210, %v500, %v460
          %v502 = vrot.slane %v462, 6
          %v503 = vsel %vm213, %v502, %v501
          %v504 = vrot.slane %v463, 5
          %v505 = vsel %vm216, %v504, %v503
          %v506 = vrot.slane %v465, 7
          %v507 = vsel %vm210, %v506, %v464
          %v508 = vrot.slane %v466, 6
          %v509 = vsel %vm213, %v508, %v507
          %v510 = vrot.slane %v467, 5
          %v511 = vsel %vm216, %v510, %v509
          %512 = vrot.lane.b32.xlu0 %v505, 120
          %v513 = vpop.permute.xlu0 %512
          %514 = vrot.lane.b32.xlu0 %v511, 120
          %v515 = vpop.permute.xlu0 %514
          %v526 = vrot.slane %v469, 7
          %v527 = vsel %vm210, %v526, %v468
          %v528 = vrot.slane %v470, 6
          %v529 = vsel %vm213, %v528, %v527
          %v530 = vrot.slane %v471, 5
          %v531 = vsel %vm216, %v530, %v529
          %v532 = vrot.slane %v473, 7
          %v533 = vsel %vm210, %v532, %v472
          %v534 = vrot.slane %v474, 6
          %v535 = vsel %vm213, %v534, %v533
          %v536 = vrot.slane %v475, 5
          %v537 = vsel %vm216, %v536, %v535
          %538 = vrot.lane.b32.xlu0 %v531, 124
          %v539 = vpop.permute.xlu0 %538
          %540 = vrot.lane.b32.xlu0 %v537, 124
          %v541 = vpop.permute.xlu0 %540
          %v552 = vrot.slane %v477, 7
          %v553 = vsel %vm210, %v552, %v476
          %v554 = vrot.slane %v478, 6
          %v555 = vsel %vm213, %v554, %v553
          %v556 = vrot.slane %v479, 5
          %v557 = vsel %vm216, %v556, %v555
          %v558 = vrot.slane %v481, 7
          %v559 = vsel %vm210, %v558, %v480
          %v560 = vrot.slane %v482, 6
          %v561 = vsel %vm213, %v560, %v559
          %v562 = vrot.slane %v483, 5
          %v563 = vsel %vm216, %v562, %v561
          %v574 = vrot.slane %v485, 7
          %v575 = vsel %vm210, %v574, %v484
          %v576 = vrot.slane %v486, 6
          %v577 = vsel %vm213, %v576, %v575
          %v578 = vrot.slane %v487, 5
          %v579 = vsel %vm216, %v578, %v577
          %v580 = vrot.slane %v489, 7
          %v581 = vsel %vm210, %v580, %v488
          %v582 = vrot.slane %v490, 6
          %v583 = vsel %vm213, %v582, %v581
          %v584 = vrot.slane %v491, 5
          %v585 = vsel %vm216, %v584, %v583
          %586 = vrot.lane.b32.xlu0 %v579, 4
          %v587 = vpop.permute.xlu0 %586
          %588 = vrot.lane.b32.xlu0 %v585, 4
          %v589 = vpop.permute.xlu0 %588
          %v592 = vsel %vm304, %v513, %v539
          %v593 = vsel %vm304, %v515, %v541
          %v594 = vsel %vm307, %v592, %v557
          %v595 = vsel %vm307, %v593, %v563
          %v596 = vsel %vm310, %v594, %v587
          %v597 = vsel %vm310, %v595, %v589
          %s598 = sadd.s32 8, %s313
          %s599 = scalar_lea.vmem %s152, %s598 [#allocation5]
          %600 = vst.msk [vmem:[%s599] sm:$0xf] %vm315, %v596
          %601 = vst.msk [vmem:[%s599 + $0x20] sm:$0xf] %vm315, %v597
          %v602 = vld [vmem:[%s162] sm:$0x1]
          %v603 = vld [vmem:[%s162 + $0x8] sm:$0x1]
          %v604 = vld [vmem:[%s162 + $0x10] sm:$0x1]
          %v605 = vld [vmem:[%s162 + $0x18] sm:$0x1]
          %v606 = vld [vmem:[%s162 + $0x20] sm:$0x1]
          %v607 = vld [vmem:[%s162 + $0x28] sm:$0x1]
          %v608 = vld [vmem:[%s162 + $0x30] sm:$0x1]
          %v609 = vld [vmem:[%s162 + $0x38] sm:$0x1]
          %v610 = vld [vmem:[%s172] sm:$0x1]
          %v611 = vld [vmem:[%s172 + $0x8] sm:$0x1]
          %v612 = vld [vmem:[%s172 + $0x10] sm:$0x1]
          %v613 = vld [vmem:[%s172 + $0x18] sm:$0x1]
          %v614 = vld [vmem:[%s172 + $0x20] sm:$0x1]
          %v615 = vld [vmem:[%s172 + $0x28] sm:$0x1]
          %v616 = vld [vmem:[%s172 + $0x30] sm:$0x1]
          %v617 = vld [vmem:[%s172 + $0x38] sm:$0x1]
          %v618 = vld [vmem:[%s182] sm:$0x1]
          %v619 = vld [vmem:[%s182 + $0x8] sm:$0x1]
          %v620 = vld [vmem:[%s182 + $0x10] sm:$0x1]
          %v621 = vld [vmem:[%s182 + $0x18] sm:$0x1]
          %v622 = vld [vmem:[%s182 + $0x20] sm:$0x1]
          %v623 = vld [vmem:[%s182 + $0x28] sm:$0x1]
          %v624 = vld [vmem:[%s182 + $0x30] sm:$0x1]
          %v625 = vld [vmem:[%s182 + $0x38] sm:$0x1]
          %v626 = vld [vmem:[%s192] sm:$0x1]
          %v627 = vld [vmem:[%s192 + $0x8] sm:$0x1]
          %v628 = vld [vmem:[%s192 + $0x10] sm:$0x1]
          %v629 = vld [vmem:[%s192 + $0x18] sm:$0x1]
          %v630 = vld [vmem:[%s192 + $0x20] sm:$0x1]
          %v631 = vld [vmem:[%s192 + $0x28] sm:$0x1]
          %v632 = vld [vmem:[%s192 + $0x30] sm:$0x1]
          %v633 = vld [vmem:[%s192 + $0x38] sm:$0x1]
          %v642 = vrot.slane %v603, 7
          %v643 = vsel %vm210, %v642, %v602
          %v644 = vrot.slane %v604, 6
          %v645 = vsel %vm213, %v644, %v643
          %v646 = vrot.slane %v605, 5
          %v647 = vsel %vm216, %v646, %v645
          %v648 = vrot.slane %v607, 7
          %v649 = vsel %vm210, %v648, %v606
          %v650 = vrot.slane %v608, 6
          %v651 = vsel %vm213, %v650, %v649
          %v652 = vrot.slane %v609, 5
          %v653 = vsel %vm216, %v652, %v651
          %654 = vrot.lane.b32.xlu0 %v647, 116
          %v655 = vpop.permute.xlu0 %654
          %656 = vrot.lane.b32.xlu0 %v653, 116
          %v657 = vpop.permute.xlu0 %656
          %v668 = vrot.slane %v611, 7
          %v669 = vsel %vm210, %v668, %v610
          %v670 = vrot.slane %v612, 6
          %v671 = vsel %vm213, %v670, %v669
          %v672 = vrot.slane %v613, 5
          %v673 = vsel %vm216, %v672, %v671
          %v674 = vrot.slane %v615, 7
          %v675 = vsel %vm210, %v674, %v614
          %v676 = vrot.slane %v616, 6
          %v677 = vsel %vm213, %v676, %v675
          %v678 = vrot.slane %v617, 5
          %v679 = vsel %vm216, %v678, %v677
          %680 = vrot.lane.b32.xlu0 %v673, 120
          %v681 = vpop.permute.xlu0 %680
          %682 = vrot.lane.b32.xlu0 %v679, 120
          %v683 = vpop.permute.xlu0 %682
          %v694 = vrot.slane %v619, 7
          %v695 = vsel %vm210, %v694, %v618
          %v696 = vrot.slane %v620, 6
          %v697 = vsel %vm213, %v696, %v695
          %v698 = vrot.slane %v621, 5
          %v699 = vsel %vm216, %v698, %v697
          %v700 = vrot.slane %v623, 7
          %v701 = vsel %vm210, %v700, %v622
          %v702 = vrot.slane %v624, 6
          %v703 = vsel %vm213, %v702, %v701
          %v704 = vrot.slane %v625, 5
          %v705 = vsel %vm216, %v704, %v703
          %706 = vrot.lane.b32.xlu0 %v699, 124
          %v707 = vpop.permute.xlu0 %706
          %708 = vrot.lane.b32.xlu0 %v705, 124
          %v709 = vpop.permute.xlu0 %708
          %v720 = vrot.slane %v627, 7
          %v721 = vsel %vm210, %v720, %v626
          %v722 = vrot.slane %v628, 6
          %v723 = vsel %vm213, %v722, %v721
          %v724 = vrot.slane %v629, 5
          %v725 = vsel %vm216, %v724, %v723
          %v726 = vrot.slane %v631, 7
          %v727 = vsel %vm210, %v726, %v630
          %v728 = vrot.slane %v632, 6
          %v729 = vsel %vm213, %v728, %v727
          %v730 = vrot.slane %v633, 5
          %v731 = vsel %vm216, %v730, %v729
          %v734 = vsel %vm304, %v655, %v681
          %v735 = vsel %vm304, %v657, %v683
          %v736 = vsel %vm307, %v734, %v707
          %v737 = vsel %vm307, %v735, %v709
          %v738 = vsel %vm310, %v736, %v725
          %v739 = vsel %vm310, %v737, %v731
          %s740 = sadd.s32 12, %s313
          %s741 = scalar_lea.vmem %s152, %s740 [#allocation5]
          %742 = vst.msk [vmem:[%s741] sm:$0xf] %vm315, %v738
          %743 = vst.msk [vmem:[%s741 + $0x20] sm:$0xf] %vm315, %v739
        $region33: #{tpu_custom_call.1} parent=23 // loop_footer
          %s160 = sadd.s32 1, %s156
        $region34: #{tpu_custom_call.1} parent=23 // loop_footer_branch
          %155 = sbr.rel target = $region30
        $region35: #{tpu_custom_call.1} parent=23 // loop_exit
          _
        %s744 = sand.u32 %s68, 1
        %s745 = scalar_lea.sflag [#allocation4], %s744
        %s746 = sand.u32 %s68, 1
        %s747 = smul.addr %s746, 64
        %s748 = scalar_lea.vmem [#allocation5], %s747
        // Predicated region
        $region36: #{tpu_custom_call.1} parent=23 // pred_check
          %p749 = pneg %p78
        $region37: #{tpu_custom_call.1} parent=23 // pred_check_branch
          %751 = sbr.rel (%p749) target = $region39
        $region38: #{tpu_custom_call.1} parent=23 // pred_region
          #allocation7 [shape = 'u32[6]{0}', space=smem, size = 0x18, scoped, tag = 'DMA stride descriptor']
          %s752 = smul.u32 2, %s22
          %s754 = ssub.s32 1024, 1024
          %755 = vsyncadd %s745, %s754
          %s756 = smul.addr %s752, 4
          %s757 = sadd.s32 %s23, %s756
          %s758 = smul.addr %s757, 64
          %s759 = scalar_lea.hbm %s1, %s758
          %s761 = sshll.u32 1, 14
          %s762 = sxor.u32 4294967295, %s761
          %s765 = sshll.u32 7, 18
          %s766 = sxor.u32 4294967295, %s765
          %s767 = sand.u32 0, %s766
          %s769 = sor.u32 %s767, 0
          %s771 = sshll.u32 3, 24
          %s772 = sxor.u32 4294967295, %s771
          %s773 = sand.u32 %s769, %s772
          %s775 = sor.u32 %s773, 0
          %s776 = sshll.u32 %s748, 4
          %s777 = int_to_ptr.vmem [resolvable:$true] %s776
          %783 = sst [smem:[#allocation7]] 512
          %s784 = scalar_lea.smem [#allocation7], 1
          %785 = sst [smem:[%s784]] 1024
          %s786 = scalar_lea.smem [#allocation7], 2
          %787 = sst [smem:[%s786]] 8
          %s788 = scalar_lea.smem [#allocation7], 3
          %789 = sst [smem:[%s788]] 64
          %s790 = scalar_lea.smem [#allocation7], 4
          %791 = sst [smem:[%s790]] 64
          %s792 = scalar_lea.smem [#allocation7], 5
          %793 = sst [smem:[%s792]] 4
          %795 = dma.general %s777, 1024, %s759, %s745, [#allocation6], [#allocation7], %s775, 0
        $region39: #{tpu_custom_call.1} parent=23 // pred_fallthru
          _
      $region24: #{tpu_custom_call.1} parent=5 // pred_fallthru
        _
      %p796 = scmp.le.s32.totalorder 2, %s13
      // Predicated region
      $region40: #{tpu_custom_call.1} parent=5 // pred_check
        %p797 = pneg %p796
      $region41: #{tpu_custom_call.1} parent=5 // pred_check_branch
        %799 = sbr.rel (%p797) target = $region43
      $region42: #{tpu_custom_call.1} parent=5 // pred_region
        %s800 = ssub.s32 %s13, 2
        // Predicated region
        $region44: #{tpu_custom_call.1} parent=42 // pred_check
          %p801 = pneg %p84
        $region45: #{tpu_custom_call.1} parent=42 // pred_check_branch
          %803 = sbr.rel (%p801) target = $region47
        $region46: #{tpu_custom_call.1} parent=42 // pred_region
          %s804 = sand.u32 %s69, 1
          %s805 = scalar_lea.sflag [#allocation4], %s804
          %s806 = sand.u32 %s69, 1
          %s807 = smul.addr %s806, 64
          %s808 = scalar_lea.vmem [#allocation5], %s807
          %809 = dma.done %s805, 1024
        $region47: #{tpu_custom_call.1} parent=42 // pred_fallthru
          _
      $region43: #{tpu_custom_call.1} parent=5 // pred_fallthru
        _
    $region6: #{tpu_custom_call.1} parent=1 // loop_footer
      %s17 = sadd.s32 1, %s13
    $region7: #{tpu_custom_call.1} parent=1 // loop_footer_branch
      %12 = sbr.rel target = $region3
    $region8: #{tpu_custom_call.1} parent=1 // loop_exit
      _
    %810 = vsyncpa [#allocation3], 1
    %s811 = scalar_lea.sflag [#allocation3], 1
    %812 = vsyncpa %s811, 1
    %813 = vsyncpa [#allocation4], 1
    %s814 = scalar_lea.sflag [#allocation4], 1
    %815 = vsyncpa %s814, 1

// kernel: tpu_custom_call.1
$region0: #{tpu_custom_call.1}
  #allocation0 [shape = 'u32[]', space=smem, size = 0x4, offset = 0x4, fixed_abs, tag = 'smem constant byte address 0x4 - core index']
  #allocation1 [shape = 'u32[144,128]{1,0:T(1,128)}', space=vmem, size = 0x12000, scoped, tag = 'internal scratch']
  #allocation6 [shape = 's32[]', space=sflag, size = 0x4, offset = 0, fixed_abs, tag = 'sflag constant byte address 0x0 - dummy sync flag']
  %s0 = inlined_call_operand.hbm [shape: f32[2,4,16,16], index: 0, kind: input, shape index: {}]
  %s1 = inlined_call_operand.hbm [shape: f32[2,4,4,4,16], index: 1, kind: output, shape index: {}]
  %s2 = sld [smem:[#allocation0]]
  $region48: #{tpu_custom_call.1} parent=0
    _
  %s4 = ssub.s32 1, %s2
  %s5 = scalar_select 0, %s4, %s2
  $region1: #{tpu_custom_call.1} parent=0
    #allocation2 [shape = 'u8[65536]{0}', space=vmem, size = 0x10000, scoped, tag = 'input window, operand 0']
    #allocation3 [shape = 's32[2]{0}', space=sflag, size = 0x8, scoped, tag = 'scoped memory for tpu_custom_call.1']
    #allocation4 [shape = 's32[2]{0}', space=sflag, size = 0x8, scoped, tag = 'scoped memory for tpu_custom_call.1']
    #allocation5 [shape = 'u8[65536]{0}', space=vmem, size = 0x10000, scoped, tag = 'output window, operand 0']
    %6 = vsyncpa [#allocation3], 0
    %s7 = scalar_lea.sflag [#allocation3], 1
    %8 = vsyncpa %s7, 0
    %9 = vsyncpa [#allocation4], 0
    %s10 = scalar_lea.sflag [#allocation4], 1
    %11 = vsyncpa %s10, 0
    loop: start=0, step=1, limit=4
    $region2: #{tpu_custom_call.1} parent=1 // loop_pre_header
      _
    $region3: #{tpu_custom_call.1} parent=1 // loop_header
      %s13 = sphi 0, %s17
      %p14 = scmp.ge.s32.totalorder %s13, 4
      %s20 = sphi 0, %s32
      %s21 = sphi 0, %s28
      %s22 = sphi 0, %s20
      %s23 = sphi 0, %s21
      %s24 = sphi 0, %s22
      %s25 = sphi 0, %s23
      %s37 = sphi 0, %s39
      %s40 = sphi 0, %s37
      %s41 = sphi 0, %s40
      %s57 = sphi 0, %s41
      %s65 = sphi 0, %s67
      %s68 = sphi 0, %s65
      %s69 = sphi 0, %s68
      %s85 = sphi 0, %s69
    $region4: #{tpu_custom_call.1} parent=1 // loop_header_branch
      %16 = sbr.rel (%p14) target = $region8
    $region5: #{tpu_custom_call.1} parent=1 // loop_body
      %s18 = ssub.s32 %s13, 1
      %s19 = ssub.s32 %s13, 2
      %s26 = sadd.s32 1, %s21
      %p27 = scmp.ge.s32.totalorder %s26, 1
      %s28 = scalar_select %p27, 0, %s26
      %s29 = sadd.s32 1, %s20
      %s30 = scalar_select %p27, %s29, %s20
      %p31 = scmp.ge.s32.totalorder %s30, 2
      %s32 = scalar_select %p31, 0, %s30
      %s33 = ssub.s32 %s21, %s28
      %s34 = ssub.s32 %s20, %s32
      %s35 = sor.u32 %s33, %s34
      %p36 = scmp.eq.s32.totalorder %s35, 0
      %s38 = sadd.s32 %s37, 1
      %s39 = scalar_select %p36, %s37, %s38
      %p42 = pneg %p36
      %p43 = scmp.eq.s32.totalorder %s13, 1
      %p44 = por %p42, %p43
      %p45 = scmp.ne.s32.totalorder %s37, %s40
      %p46 = scmp.eq.s32.totalorder %s13, 0
      %p47 = por %p45, %p46
      %p48 = scmp.ne.s32.totalorder %s37, %s40
      %p49 = scmp.eq.s32.totalorder %s18, 1
      %p50 = por %p48, %p49
      %p51 = scmp.ne.s32.totalorder %s40, %s41
      %p52 = scmp.eq.s32.totalorder %s18, 0
      %p53 = por %p51, %p52
      %p54 = scmp.ne.s32.totalorder %s40, %s41
      %p55 = scmp.eq.s32.totalorder %s19, 1
      %p56 = por %p54, %p55
      %p58 = scmp.ne.s32.totalorder %s41, %s57
      %p59 = scmp.eq.s32.totalorder %s19, 0
      %p60 = por %p58, %p59
      %s61 = ssub.s32 %s20, %s32
      %s62 = ssub.s32 %s21, %s28
      %s63 = sor.u32 %s61, %s62
      %p64 = scmp.eq.s32.totalorder %s63, 0
      %s66 = sadd.s32 %s65, 1
      %s67 = scalar_select %p64, %s65, %s66
      %p70 = pneg %p64
      %p71 = scmp.eq.s32.totalorder %s13, 1
      %p72 = por %p70, %p71
      %p73 = scmp.ne.s32.totalorder %s65, %s68
      %p74 = scmp.eq.s32.totalorder %s13, 0
      %p75 = por %p73, %p74
      %p76 = scmp.ne.s32.totalorder %s65, %s68
      %p77 = scmp.eq.s32.totalorder %s18, 1
      %p78 = por %p76, %p77
      %p79 = scmp.ne.s32.totalorder %s68, %s69
      %p80 = scmp.eq.s32.totalorder %s18, 0
      %p81 = por %p79, %p80
      %p82 = scmp.ne.s32.totalorder %s68, %s69
      %p83 = scmp.eq.s32.totalorder %s19, 1
      %p84 = por %p82, %p83
      %p86 = scmp.ne.s32.totalorder %s69, %s85
      %p87 = scmp.eq.s32.totalorder %s19, 0
      %p88 = por %p86, %p87
      %p89 = scmp.le.s32.totalorder 1, %s13
      %p90 = scmp.lt.s32.totalorder %s13, 3
      %p91 = pnand %p89, %p90
      %p92 = pneg %p91
      // Predicated region
      $region9: #{tpu_custom_call.1} parent=5 // pred_check
        _
      $region10: #{tpu_custom_call.1} parent=5 // pred_check_branch
        %94 = sbr.rel (%p91) target = $region12
      $region11: #{tpu_custom_call.1} parent=5 // pred_region
        %s95 = ssub.s32 %s13, 1
      $region12: #{tpu_custom_call.1} parent=5 // pred_fallthru
        _
      %p96 = scmp.lt.s32.totalorder %s13, 2
      // Predicated region
      $region13: #{tpu_custom_call.1} parent=5 // pred_check
        %p97 = pneg %p96
      $region14: #{tpu_custom_call.1} parent=5 // pred_check_branch
        %99 = sbr.rel (%p97) target = $region16
      $region15: #{tpu_custom_call.1} parent=5 // pred_region
        // Predicated region
        $region17: #{tpu_custom_call.1} parent=15 // pred_check
          %p100 = pneg %p47
        $region18: #{tpu_custom_call.1} parent=15 // pred_check_branch
          %102 = sbr.rel (%p100) target = $region20
        $region19: #{tpu_custom_call.1} parent=15 // pred_region
          %s103 = sand.u32 %s37, 1
          %s104 = scalar_lea.sflag [#allocation3], %s103
          %s105 = sand.u32 %s37, 1
          %s106 = smul.addr %s105, 64
          %s107 = scalar_lea.vmem [#allocation2], %s106
          %s108 = smul.u32 4, %s21
          %s110 = ssub.s32 1024, 1024
          %111 = vsyncadd %s104, %s110
          %s112 = smul.addr %s108, 2
          %s113 = sadd.s32 %s20, %s112
          %s114 = smul.addr %s113, 128
          %s115 = scalar_lea.hbm %s0, %s114
          %s116 = sshll.u32 %s107, 4
          %s117 = int_to_ptr.vmem [resolvable:$true] %s116
          %122 = dma.hbm_to_vmem [thread:$0]  %s115, 1024, %s117, %s104, 256, 128, 8
        $region20: #{tpu_custom_call.1} parent=15 // pred_fallthru
          _
      $region16: #{tpu_custom_call.1} parent=5 // pred_fallthru
        _
      %p123 = scmp.le.s32.totalorder 1, %s13
      %p124 = scmp.lt.s32.totalorder %s13, 3
      %p125 = pnand %p123, %p124
      %p126 = pneg %p125
      // Predicated region
      $region21: #{tpu_custom_call.1} parent=5 // pred_check
        _
      $region22: #{tpu_custom_call.1} parent=5 // pred_check_branch
        %128 = sbr.rel (%p125) target = $region24
      $region23: #{tpu_custom_call.1} parent=5 // pred_region
        %s129 = ssub.s32 %s13, 1
        %s130 = sand.u32 %s40, 1
        %s131 = scalar_lea.sflag [#allocation3], %s130
        %s132 = sand.u32 %s40, 1
        %s133 = smul.addr %s132, 64
        %s134 = scalar_lea.vmem [#allocation2], %s133
        // Predicated region
        $region25: #{tpu_custom_call.1} parent=23 // pred_check
          %p135 = pneg %p53
        $region26: #{tpu_custom_call.1} parent=23 // pred_check_branch
          %137 = sbr.rel (%p135) target = $region28
        $region27: #{tpu_custom_call.1} parent=23 // pred_region
          %138 = dma.done %s131, 1024
        $region28: #{tpu_custom_call.1} parent=23 // pred_fallthru
          _
        %s139 = sand.u32 %s40, 1
        %s140 = scalar_lea.sflag [#allocation3], %s139
        %s141 = sand.u32 %s40, 1
        %s142 = smul.addr %s141, 64
        %s143 = scalar_lea.vmem [#allocation2], %s142
        %p144 = pneg %p53
        %p145 = pneg %p50
        %p146 = pneg %p81
        %p147 = pneg %p78
        %s148 = sand.u32 %s68, 1
        %s149 = scalar_lea.sflag [#allocation4], %s148
        %s150 = sand.u32 %s68, 1
        %s151 = smul.addr %s150, 64
        %s152 = scalar_lea.vmem [#allocation5], %s151
        %s153 = smul.u32 4, %s23
        %s154 = smul.u32 2, %s22
        loop: start=0, step=1, limit=2
        $region29: #{tpu_custom_call.1} parent=23 // loop_pre_header
          _
        $region30: #{tpu_custom_call.1} parent=23 // loop_header
          %s156 = sphi 0, %s160
          %p157 = scmp.ge.s32.totalorder %s156, 2
        $region31: #{tpu_custom_call.1} parent=23 // loop_header_branch
          %159 = sbr.rel (%p157) target = $region35
        $region32: #{tpu_custom_call.1} parent=23 // loop_body
          %s161 = smul.u32 %s156, 4
          %s162 = scalar_lea.vmem %s134, %s161 [#allocation2]
          %v163 = vld [vmem:[%s162] sm:$0x1]
          %v164 = vld [vmem:[%s162 + $0x8] sm:$0x1]
          %v165 = vld [vmem:[%s162 + $0x10] sm:$0x1]
          %v166 = vld [vmem:[%s162 + $0x18] sm:$0x1]
          %v167 = vld [vmem:[%s162 + $0x20] sm:$0x1]
          %v168 = vld [vmem:[%s162 + $0x28] sm:$0x1]
          %v169 = vld [vmem:[%s162 + $0x30] sm:$0x1]
          %v170 = vld [vmem:[%s162 + $0x38] sm:$0x1]
          %v179 = vrot.slane %v164, 7
          %vm180 = vcmask 1041409
          %v181 = vsel %vm180, %v179, %v163
          %v182 = vrot.slane %v165, 6
          %vm183 = vcmask 1042434
          %v184 = vsel %vm183, %v182, %v181
          %v185 = vrot.slane %v166, 5
          %vm186 = vcmask 1043459
          %v187 = vsel %vm186, %v185, %v184
          %v188 = vrot.slane %v168, 7
          %v189 = vsel %vm180, %v188, %v167
          %v190 = vrot.slane %v169, 6
          %v191 = vsel %vm183, %v190, %v189
          %v192 = vrot.slane %v170, 5
          %v193 = vsel %vm186, %v192, %v191
          %s196 = smul.u32 %s156, 16
          %s197 = scalar_lea.vmem %s152, %s196 [#allocation5]
          %vm198 = vcmask 27648
          %199 = vst.msk [vmem:[%s197] sm:$0xf] %vm198, %v187
          %200 = vst.msk [vmem:[%s197 + $0x20] sm:$0xf] %vm198, %v193
          %s201 = sadd.s32 %s161, 1
          %s202 = scalar_lea.vmem %s134, %s201 [#allocation2]
          %v203 = vld [vmem:[%s202] sm:$0x1]
          %v204 = vld [vmem:[%s202 + $0x8] sm:$0x1]
          %v205 = vld [vmem:[%s202 + $0x10] sm:$0x1]
          %v206 = vld [vmem:[%s202 + $0x18] sm:$0x1]
          %v207 = vld [vmem:[%s202 + $0x20] sm:$0x1]
          %v208 = vld [vmem:[%s202 + $0x28] sm:$0x1]
          %v209 = vld [vmem:[%s202 + $0x30] sm:$0x1]
          %v210 = vld [vmem:[%s202 + $0x38] sm:$0x1]
          %v219 = vrot.slane %v204, 7
          %v220 = vsel %vm180, %v219, %v203
          %v221 = vrot.slane %v205, 6
          %v222 = vsel %vm183, %v221, %v220
          %v223 = vrot.slane %v206, 5
          %v224 = vsel %vm186, %v223, %v222
          %v225 = vrot.slane %v208, 7
          %v226 = vsel %vm180, %v225, %v207
          %v227 = vrot.slane %v209, 6
          %v228 = vsel %vm183, %v227, %v226
          %v229 = vrot.slane %v210, 5
          %v230 = vsel %vm186, %v229, %v228
          %231 = vrot.lane.b32.xlu0 %v224, 4
          %v232 = vpop.permute.xlu0 %231
          %233 = vrot.lane.b32.xlu0 %v230, 4
          %v234 = vpop.permute.xlu0 %233
          %vm237 = vcmask 60448
          %238 = vst.msk [vmem:[%s197] sm:$0xf] %vm237, %v232
          %239 = vst.msk [vmem:[%s197 + $0x20] sm:$0xf] %vm237, %v234
          %s240 = sadd.s32 %s161, 2
          %s241 = scalar_lea.vmem %s134, %s240 [#allocation2]
          %v242 = vld [vmem:[%s241] sm:$0x1]
          %v243 = vld [vmem:[%s241 + $0x8] sm:$0x1]
          %v244 = vld [vmem:[%s241 + $0x10] sm:$0x1]
          %v245 = vld [vmem:[%s241 + $0x18] sm:$0x1]
          %v246 = vld [vmem:[%s241 + $0x20] sm:$0x1]
          %v247 = vld [vmem:[%s241 + $0x28] sm:$0x1]
          %v248 = vld [vmem:[%s241 + $0x30] sm:$0x1]
          %v249 = vld [vmem:[%s241 + $0x38] sm:$0x1]
          %v258 = vrot.slane %v243, 7
          %v259 = vsel %vm180, %v258, %v242
          %v260 = vrot.slane %v244, 6
          %v261 = vsel %vm183, %v260, %v259
          %v262 = vrot.slane %v245, 5
          %v263 = vsel %vm186, %v262, %v261
          %v264 = vrot.slane %v247, 7
          %v265 = vsel %vm180, %v264, %v246
          %v266 = vrot.slane %v248, 6
          %v267 = vsel %vm183, %v266, %v265
          %v268 = vrot.slane %v249, 5
          %v269 = vsel %vm186, %v268, %v267
          %270 = vrot.lane.b32.xlu0 %v263, 8
          %v271 = vpop.permute.xlu0 %270
          %272 = vrot.lane.b32.xlu0 %v269, 8
          %v273 = vpop.permute.xlu0 %272
          %vm276 = vcmask 93248
          %277 = vst.msk [vmem:[%s197] sm:$0xf] %vm276, %v271
          %278 = vst.msk [vmem:[%s197 + $0x20] sm:$0xf] %vm276, %v273
          %s279 = sadd.s32 %s161, 3
          %s280 = scalar_lea.vmem %s134, %s279 [#allocation2]
          %v281 = vld [vmem:[%s280] sm:$0x1]
          %v282 = vld [vmem:[%s280 + $0x8] sm:$0x1]
          %v283 = vld [vmem:[%s280 + $0x10] sm:$0x1]
          %v284 = vld [vmem:[%s280 + $0x18] sm:$0x1]
          %v285 = vld [vmem:[%s280 + $0x20] sm:$0x1]
          %v286 = vld [vmem:[%s280 + $0x28] sm:$0x1]
          %v287 = vld [vmem:[%s280 + $0x30] sm:$0x1]
          %v288 = vld [vmem:[%s280 + $0x38] sm:$0x1]
          %v297 = vrot.slane %v282, 7
          %v298 = vsel %vm180, %v297, %v281
          %v299 = vrot.slane %v283, 6
          %v300 = vsel %vm183, %v299, %v298
          %v301 = vrot.slane %v284, 5
          %v302 = vsel %vm186, %v301, %v300
          %v303 = vrot.slane %v286, 7
          %v304 = vsel %vm180, %v303, %v285
          %v305 = vrot.slane %v287, 6
          %v306 = vsel %vm183, %v305, %v304
          %v307 = vrot.slane %v288, 5
          %v308 = vsel %vm186, %v307, %v306
          %309 = vrot.lane.b32.xlu0 %v302, 12
          %v310 = vpop.permute.xlu0 %309
          %311 = vrot.lane.b32.xlu0 %v308, 12
          %v312 = vpop.permute.xlu0 %311
          %vm315 = vcmask 126048
          %316 = vst.msk [vmem:[%s197] sm:$0xf] %vm315, %v310
          %317 = vst.msk [vmem:[%s197 + $0x20] sm:$0xf] %vm315, %v312
          %v318 = vld [vmem:[%s162] sm:$0x1]
          %v319 = vld [vmem:[%s162 + $0x8] sm:$0x1]
          %v320 = vld [vmem:[%s162 + $0x10] sm:$0x1]
          %v321 = vld [vmem:[%s162 + $0x18] sm:$0x1]
          %v322 = vld [vmem:[%s162 + $0x20] sm:$0x1]
          %v323 = vld [vmem:[%s162 + $0x28] sm:$0x1]
          %v324 = vld [vmem:[%s162 + $0x30] sm:$0x1]
          %v325 = vld [vmem:[%s162 + $0x38] sm:$0x1]
          %v334 = vrot.slane %v319, 7
          %v335 = vsel %vm180, %v334, %v318
          %v336 = vrot.slane %v320, 6
          %v337 = vsel %vm183, %v336, %v335
          %v338 = vrot.slane %v321, 5
          %v339 = vsel %vm186, %v338, %v337
          %v340 = vrot.slane %v323, 7
          %v341 = vsel %vm180, %v340, %v322
          %v342 = vrot.slane %v324, 6
          %v343 = vsel %vm183, %v342, %v341
          %v344 = vrot.slane %v325, 5
          %v345 = vsel %vm186, %v344, %v343
          %346 = vrot.lane.b32.xlu0 %v339, 124
          %v347 = vpop.permute.xlu0 %346
          %348 = vrot.lane.b32.xlu0 %v345, 124
          %v349 = vpop.permute.xlu0 %348
          %s352 = sadd.s32 4, %s196
          %s353 = scalar_lea.vmem %s152, %s352 [#allocation5]
          %354 = vst.msk [vmem:[%s353] sm:$0xf] %vm198, %v347
          %355 = vst.msk [vmem:[%s353 + $0x20] sm:$0xf] %vm198, %v349
          %v356 = vld [vmem:[%s202] sm:$0x1]
          %v357 = vld [vmem:[%s202 + $0x8] sm:$0x1]
          %v358 = vld [vmem:[%s202 + $0x10] sm:$0x1]
          %v359 = vld [vmem:[%s202 + $0x18] sm:$0x1]
          %v360 = vld [vmem:[%s202 + $0x20] sm:$0x1]
          %v361 = vld [vmem:[%s202 + $0x28] sm:$0x1]
          %v362 = vld [vmem:[%s202 + $0x30] sm:$0x1]
          %v363 = vld [vmem:[%s202 + $0x38] sm:$0x1]
          %v372 = vrot.slane %v357, 7
          %v373 = vsel %vm180, %v372, %v356
          %v374 = vrot.slane %v358, 6
          %v375 = vsel %vm183, %v374, %v373
          %v376 = vrot.slane %v359, 5
          %v377 = vsel %vm186, %v376, %v375
          %v378 = vrot.slane %v361, 7
          %v379 = vsel %vm180, %v378, %v360
          %v380 = vrot.slane %v362, 6
          %v381 = vsel %vm183, %v380, %v379
          %v382 = vrot.slane %v363, 5
          %v383 = vsel %vm186, %v382, %v381
          %386 = vst.msk [vmem:[%s353] sm:$0xf] %vm237, %v377
          %387 = vst.msk [vmem:[%s353 + $0x20] sm:$0xf] %vm237, %v383
          %v388 = vld [vmem:[%s241] sm:$0x1]
          %v389 = vld [vmem:[%s241 + $0x8] sm:$0x1]
          %v390 = vld [vmem:[%s241 + $0x10] sm:$0x1]
          %v391 = vld [vmem:[%s241 + $0x18] sm:$0x1]
          %v392 = vld [vmem:[%s241 + $0x20] sm:$0x1]
          %v393 = vld [vmem:[%s241 + $0x28] sm:$0x1]
          %v394 = vld [vmem:[%s241 + $0x30] sm:$0x1]
          %v395 = vld [vmem:[%s241 + $0x38] sm:$0x1]
          %v404 = vrot.slane %v389, 7
          %v405 = vsel %vm180, %v404, %v388
          %v406 = vrot.slane %v390, 6
          %v407 = vsel %vm183, %v406, %v405
          %v408 = vrot.slane %v391, 5
          %v409 = vsel %vm186, %v408, %v407
          %v410 = vrot.slane %v393, 7
          %v411 = vsel %vm180, %v410, %v392
          %v412 = vrot.slane %v394, 6
          %v413 = vsel %vm183, %v412, %v411
          %v414 = vrot.slane %v395, 5
          %v415 = vsel %vm186, %v414, %v413
          %416 = vrot.lane.b32.xlu0 %v409, 4
          %v417 = vpop.permute.xlu0 %416
          %418 = vrot.lane.b32.xlu0 %v415, 4
          %v419 = vpop.permute.xlu0 %418
          %422 = vst.msk [vmem:[%s353] sm:$0xf] %vm276, %v417
          %423 = vst.msk [vmem:[%s353 + $0x20] sm:$0xf] %vm276, %v419
          %v424 = vld [vmem:[%s280] sm:$0x1]
          %v425 = vld [vmem:[%s280 + $0x8] sm:$0x1]
          %v426 = vld [vmem:[%s280 + $0x10] sm:$0x1]
          %v427 = vld [vmem:[%s280 + $0x18] sm:$0x1]
          %v428 = vld [vmem:[%s280 + $0x20] sm:$0x1]
          %v429 = vld [vmem:[%s280 + $0x28] sm:$0x1]
          %v430 = vld [vmem:[%s280 + $0x30] sm:$0x1]
          %v431 = vld [vmem:[%s280 + $0x38] sm:$0x1]
          %v440 = vrot.slane %v425, 7
          %v441 = vsel %vm180, %v440, %v424
          %v442 = vrot.slane %v426, 6
          %v443 = vsel %vm183, %v442, %v441
          %v444 = vrot.slane %v427, 5
          %v445 = vsel %vm186, %v444, %v443
          %v446 = vrot.slane %v429, 7
          %v447 = vsel %vm180, %v446, %v428
          %v448 = vrot.slane %v430, 6
          %v449 = vsel %vm183, %v448, %v447
          %v450 = vrot.slane %v431, 5
          %v451 = vsel %vm186, %v450, %v449
          %452 = vrot.lane.b32.xlu0 %v445, 8
          %v453 = vpop.permute.xlu0 %452
          %454 = vrot.lane.b32.xlu0 %v451, 8
          %v455 = vpop.permute.xlu0 %454
          %458 = vst.msk [vmem:[%s353] sm:$0xf] %vm315, %v453
          %459 = vst.msk [vmem:[%s353 + $0x20] sm:$0xf] %vm315, %v455
          %v460 = vld [vmem:[%s162] sm:$0x1]
          %v461 = vld [vmem:[%s162 + $0x8] sm:$0x1]
          %v462 = vld [vmem:[%s162 + $0x10] sm:$0x1]
          %v463 = vld [vmem:[%s162 + $0x18] sm:$0x1]
          %v464 = vld [vmem:[%s162 + $0x20] sm:$0x1]
          %v465 = vld [vmem:[%s162 + $0x28] sm:$0x1]
          %v466 = vld [vmem:[%s162 + $0x30] sm:$0x1]
          %v467 = vld [vmem:[%s162 + $0x38] sm:$0x1]
          %v476 = vrot.slane %v461, 7
          %v477 = vsel %vm180, %v476, %v460
          %v478 = vrot.slane %v462, 6
          %v479 = vsel %vm183, %v478, %v477
          %v480 = vrot.slane %v463, 5
          %v481 = vsel %vm186, %v480, %v479
          %v482 = vrot.slane %v465, 7
          %v483 = vsel %vm180, %v482, %v464
          %v484 = vrot.slane %v466, 6
          %v485 = vsel %vm183, %v484, %v483
          %v486 = vrot.slane %v467, 5
          %v487 = vsel %vm186, %v486, %v485
          %488 = vrot.lane.b32.xlu0 %v481, 120
          %v489 = vpop.permute.xlu0 %488
          %490 = vrot.lane.b32.xlu0 %v487, 120
          %v491 = vpop.permute.xlu0 %490
          %s494 = sadd.s32 8, %s196
          %s495 = scalar_lea.vmem %s152, %s494 [#allocation5]
          %496 = vst.msk [vmem:[%s495] sm:$0xf] %vm198, %v489
          %497 = vst.msk [vmem:[%s495 + $0x20] sm:$0xf] %vm198, %v491
          %v498 = vld [vmem:[%s202] sm:$0x1]
          %v499 = vld [vmem:[%s202 + $0x8] sm:$0x1]
          %v500 = vld [vmem:[%s202 + $0x10] sm:$0x1]
          %v501 = vld [vmem:[%s202 + $0x18] sm:$0x1]
          %v502 = vld [vmem:[%s202 + $0x20] sm:$0x1]
          %v503 = vld [vmem:[%s202 + $0x28] sm:$0x1]
          %v504 = vld [vmem:[%s202 + $0x30] sm:$0x1]
          %v505 = vld [vmem:[%s202 + $0x38] sm:$0x1]
          %v514 = vrot.slane %v499, 7
          %v515 = vsel %vm180, %v514, %v498
          %v516 = vrot.slane %v500, 6
          %v517 = vsel %vm183, %v516, %v515
          %v518 = vrot.slane %v501, 5
          %v519 = vsel %vm186, %v518, %v517
          %v520 = vrot.slane %v503, 7
          %v521 = vsel %vm180, %v520, %v502
          %v522 = vrot.slane %v504, 6
          %v523 = vsel %vm183, %v522, %v521
          %v524 = vrot.slane %v505, 5
          %v525 = vsel %vm186, %v524, %v523
          %526 = vrot.lane.b32.xlu0 %v519, 124
          %v527 = vpop.permute.xlu0 %526
          %528 = vrot.lane.b32.xlu0 %v525, 124
          %v529 = vpop.permute.xlu0 %528
          %532 = vst.msk [vmem:[%s495] sm:$0xf] %vm237, %v527
          %533 = vst.msk [vmem:[%s495 + $0x20] sm:$0xf] %vm237, %v529
          %v534 = vld [vmem:[%s241] sm:$0x1]
          %v535 = vld [vmem:[%s241 + $0x8] sm:$0x1]
          %v536 = vld [vmem:[%s241 + $0x10] sm:$0x1]
          %v537 = vld [vmem:[%s241 + $0x18] sm:$0x1]
          %v538 = vld [vmem:[%s241 + $0x20] sm:$0x1]
          %v539 = vld [vmem:[%s241 + $0x28] sm:$0x1]
          %v540 = vld [vmem:[%s241 + $0x30] sm:$0x1]
          %v541 = vld [vmem:[%s241 + $0x38] sm:$0x1]
          %v550 = vrot.slane %v535, 7
          %v551 = vsel %vm180, %v550, %v534
          %v552 = vrot.slane %v536, 6
          %v553 = vsel %vm183, %v552, %v551
          %v554 = vrot.slane %v537, 5
          %v555 = vsel %vm186, %v554, %v553
          %v556 = vrot.slane %v539, 7
          %v557 = vsel %vm180, %v556, %v538
          %v558 = vrot.slane %v540, 6
          %v559 = vsel %vm183, %v558, %v557
          %v560 = vrot.slane %v541, 5
          %v561 = vsel %vm186, %v560, %v559
          %564 = vst.msk [vmem:[%s495] sm:$0xf] %vm276, %v555
          %565 = vst.msk [vmem:[%s495 + $0x20] sm:$0xf] %vm276, %v561
          %v566 = vld [vmem:[%s280] sm:$0x1]
          %v567 = vld [vmem:[%s280 + $0x8] sm:$0x1]
          %v568 = vld [vmem:[%s280 + $0x10] sm:$0x1]
          %v569 = vld [vmem:[%s280 + $0x18] sm:$0x1]
          %v570 = vld [vmem:[%s280 + $0x20] sm:$0x1]
          %v571 = vld [vmem:[%s280 + $0x28] sm:$0x1]
          %v572 = vld [vmem:[%s280 + $0x30] sm:$0x1]
          %v573 = vld [vmem:[%s280 + $0x38] sm:$0x1]
          %v582 = vrot.slane %v567, 7
          %v583 = vsel %vm180, %v582, %v566
          %v584 = vrot.slane %v568, 6
          %v585 = vsel %vm183, %v584, %v583
          %v586 = vrot.slane %v569, 5
          %v587 = vsel %vm186, %v586, %v585
          %v588 = vrot.slane %v571, 7
          %v589 = vsel %vm180, %v588, %v570
          %v590 = vrot.slane %v572, 6
          %v591 = vsel %vm183, %v590, %v589
          %v592 = vrot.slane %v573, 5
          %v593 = vsel %vm186, %v592, %v591
          %594 = vrot.lane.b32.xlu0 %v587, 4
          %v595 = vpop.permute.xlu0 %594
          %596 = vrot.lane.b32.xlu0 %v593, 4
          %v597 = vpop.permute.xlu0 %596
          %600 = vst.msk [vmem:[%s495] sm:$0xf] %vm315, %v595
          %601 = vst.msk [vmem:[%s495 + $0x20] sm:$0xf] %vm315, %v597
          %v602 = vld [vmem:[%s162] sm:$0x1]
          %v603 = vld [vmem:[%s162 + $0x8] sm:$0x1]
          %v604 = vld [vmem:[%s162 + $0x10] sm:$0x1]
          %v605 = vld [vmem:[%s162 + $0x18] sm:$0x1]
          %v606 = vld [vmem:[%s162 + $0x20] sm:$0x1]
          %v607 = vld [vmem:[%s162 + $0x28] sm:$0x1]
          %v608 = vld [vmem:[%s162 + $0x30] sm:$0x1]
          %v609 = vld [vmem:[%s162 + $0x38] sm:$0x1]
          %v618 = vrot.slane %v603, 7
          %v619 = vsel %vm180, %v618, %v602
          %v620 = vrot.slane %v604, 6
          %v621 = vsel %vm183, %v620, %v619
          %v622 = vrot.slane %v605, 5
          %v623 = vsel %vm186, %v622, %v621
          %v624 = vrot.slane %v607, 7
          %v625 = vsel %vm180, %v624, %v606
          %v626 = vrot.slane %v608, 6
          %v627 = vsel %vm183, %v626, %v625
          %v628 = vrot.slane %v609, 5
          %v629 = vsel %vm186, %v628, %v627
          %630 = vrot.lane.b32.xlu0 %v623, 116
          %v631 = vpop.permute.xlu0 %630
          %632 = vrot.lane.b32.xlu0 %v629, 116
          %v633 = vpop.permute.xlu0 %632
          %s636 = sadd.s32 12, %s196
          %s637 = scalar_lea.vmem %s152, %s636 [#allocation5]
          %638 = vst.msk [vmem:[%s637] sm:$0xf] %vm198, %v631
          %639 = vst.msk [vmem:[%s637 + $0x20] sm:$0xf] %vm198, %v633
          %v640 = vld [vmem:[%s202] sm:$0x1]
          %v641 = vld [vmem:[%s202 + $0x8] sm:$0x1]
          %v642 = vld [vmem:[%s202 + $0x10] sm:$0x1]
          %v643 = vld [vmem:[%s202 + $0x18] sm:$0x1]
          %v644 = vld [vmem:[%s202 + $0x20] sm:$0x1]
          %v645 = vld [vmem:[%s202 + $0x28] sm:$0x1]
          %v646 = vld [vmem:[%s202 + $0x30] sm:$0x1]
          %v647 = vld [vmem:[%s202 + $0x38] sm:$0x1]
          %v656 = vrot.slane %v641, 7
          %v657 = vsel %vm180, %v656, %v640
          %v658 = vrot.slane %v642, 6
          %v659 = vsel %vm183, %v658, %v657
          %v660 = vrot.slane %v643, 5
          %v661 = vsel %vm186, %v660, %v659
          %v662 = vrot.slane %v645, 7
          %v663 = vsel %vm180, %v662, %v644
          %v664 = vrot.slane %v646, 6
          %v665 = vsel %vm183, %v664, %v663
          %v666 = vrot.slane %v647, 5
          %v667 = vsel %vm186, %v666, %v665
          %668 = vrot.lane.b32.xlu0 %v661, 120
          %v669 = vpop.permute.xlu0 %668
          %670 = vrot.lane.b32.xlu0 %v667, 120
          %v671 = vpop.permute.xlu0 %670
          %674 = vst.msk [vmem:[%s637] sm:$0xf] %vm237, %v669
          %675 = vst.msk [vmem:[%s637 + $0x20] sm:$0xf] %vm237, %v671
          %v676 = vld [vmem:[%s241] sm:$0x1]
          %v677 = vld [vmem:[%s241 + $0x8] sm:$0x1]
          %v678 = vld [vmem:[%s241 + $0x10] sm:$0x1]
          %v679 = vld [vmem:[%s241 + $0x18] sm:$0x1]
          %v680 = vld [vmem:[%s241 + $0x20] sm:$0x1]
          %v681 = vld [vmem:[%s241 + $0x28] sm:$0x1]
          %v682 = vld [vmem:[%s241 + $0x30] sm:$0x1]
          %v683 = vld [vmem:[%s241 + $0x38] sm:$0x1]
          %v692 = vrot.slane %v677, 7
          %v693 = vsel %vm180, %v692, %v676
          %v694 = vrot.slane %v678, 6
          %v695 = vsel %vm183, %v694, %v693
          %v696 = vrot.slane %v679, 5
          %v697 = vsel %vm186, %v696, %v695
          %v698 = vrot.slane %v681, 7
          %v699 = vsel %vm180, %v698, %v680
          %v700 = vrot.slane %v682, 6
          %v701 = vsel %vm183, %v700, %v699
          %v702 = vrot.slane %v683, 5
          %v703 = vsel %vm186, %v702, %v701
          %704 = vrot.lane.b32.xlu0 %v697, 124
          %v705 = vpop.permute.xlu0 %704
          %706 = vrot.lane.b32.xlu0 %v703, 124
          %v707 = vpop.permute.xlu0 %706
          %710 = vst.msk [vmem:[%s637] sm:$0xf] %vm276, %v705
          %711 = vst.msk [vmem:[%s637 + $0x20] sm:$0xf] %vm276, %v707
          %v712 = vld [vmem:[%s280] sm:$0x1]
          %v713 = vld [vmem:[%s280 + $0x8] sm:$0x1]
          %v714 = vld [vmem:[%s280 + $0x10] sm:$0x1]
          %v715 = vld [vmem:[%s280 + $0x18] sm:$0x1]
          %v716 = vld [vmem:[%s280 + $0x20] sm:$0x1]
          %v717 = vld [vmem:[%s280 + $0x28] sm:$0x1]
          %v718 = vld [vmem:[%s280 + $0x30] sm:$0x1]
          %v719 = vld [vmem:[%s280 + $0x38] sm:$0x1]
          %v728 = vrot.slane %v713, 7
          %v729 = vsel %vm180, %v728, %v712
          %v730 = vrot.slane %v714, 6
          %v731 = vsel %vm183, %v730, %v729
          %v732 = vrot.slane %v715, 5
          %v733 = vsel %vm186, %v732, %v731
          %v734 = vrot.slane %v717, 7
          %v735 = vsel %vm180, %v734, %v716
          %v736 = vrot.slane %v718, 6
          %v737 = vsel %vm183, %v736, %v735
          %v738 = vrot.slane %v719, 5
          %v739 = vsel %vm186, %v738, %v737
          %742 = vst.msk [vmem:[%s637] sm:$0xf] %vm315, %v733
          %743 = vst.msk [vmem:[%s637 + $0x20] sm:$0xf] %vm315, %v739
        $region33: #{tpu_custom_call.1} parent=23 // loop_footer
          %s160 = sadd.s32 1, %s156
        $region34: #{tpu_custom_call.1} parent=23 // loop_footer_branch
          %155 = sbr.rel target = $region30
        $region35: #{tpu_custom_call.1} parent=23 // loop_exit
          _
        %s744 = sand.u32 %s68, 1
        %s745 = scalar_lea.sflag [#allocation4], %s744
        %s746 = sand.u32 %s68, 1
        %s747 = smul.addr %s746, 64
        %s748 = scalar_lea.vmem [#allocation5], %s747
        // Predicated region
        $region36: #{tpu_custom_call.1} parent=23 // pred_check
          %p749 = pneg %p78
        $region37: #{tpu_custom_call.1} parent=23 // pred_check_branch
          %751 = sbr.rel (%p749) target = $region39
        $region38: #{tpu_custom_call.1} parent=23 // pred_region
          #allocation7 [shape = 'u32[6]{0}', space=smem, size = 0x18, scoped, tag = 'DMA stride descriptor']
          %s752 = smul.u32 2, %s22
          %s754 = ssub.s32 1024, 1024
          %755 = vsyncadd %s745, %s754
          %s756 = smul.addr %s752, 4
          %s757 = sadd.s32 %s23, %s756
          %s758 = smul.addr %s757, 64
          %s759 = scalar_lea.hbm %s1, %s758
          %s761 = sshll.u32 1, 14
          %s762 = sxor.u32 4294967295, %s761
          %s765 = sshll.u32 7, 18
          %s766 = sxor.u32 4294967295, %s765
          %s767 = sand.u32 0, %s766
          %s769 = sor.u32 %s767, 0
          %s771 = sshll.u32 3, 24
          %s772 = sxor.u32 4294967295, %s771
          %s773 = sand.u32 %s769, %s772
          %s775 = sor.u32 %s773, 0
          %s776 = sshll.u32 %s748, 4
          %s777 = int_to_ptr.vmem [resolvable:$true] %s776
          %783 = sst [smem:[#allocation7]] 512
          %s784 = scalar_lea.smem [#allocation7], 1
          %785 = sst [smem:[%s784]] 1024
          %s786 = scalar_lea.smem [#allocation7], 2
          %787 = sst [smem:[%s786]] 8
          %s788 = scalar_lea.smem [#allocation7], 3
          %789 = sst [smem:[%s788]] 64
          %s790 = scalar_lea.smem [#allocation7], 4
          %791 = sst [smem:[%s790]] 64
          %s792 = scalar_lea.smem [#allocation7], 5
          %793 = sst [smem:[%s792]] 4
          %795 = dma.general %s777, 1024, %s759, %s745, [#allocation6], [#allocation7], %s775, 0
        $region39: #{tpu_custom_call.1} parent=23 // pred_fallthru
          _
      $region24: #{tpu_custom_call.1} parent=5 // pred_fallthru
        _
      %p796 = scmp.le.s32.totalorder 2, %s13
      // Predicated region
      $region40: #{tpu_custom_call.1} parent=5 // pred_check
        %p797 = pneg %p796
      $region41: #{tpu_custom_call.1} parent=5 // pred_check_branch
        %799 = sbr.rel (%p797) target = $region43
      $region42: #{tpu_custom_call.1} parent=5 // pred_region
        %s800 = ssub.s32 %s13, 2
        // Predicated region
        $region44: #{tpu_custom_call.1} parent=42 // pred_check
          %p801 = pneg %p84
        $region45: #{tpu_custom_call.1} parent=42 // pred_check_branch
          %803 = sbr.rel (%p801) target = $region47
        $region46: #{tpu_custom_call.1} parent=42 // pred_region
          %s804 = sand.u32 %s69, 1
          %s805 = scalar_lea.sflag [#allocation4], %s804
          %s806 = sand.u32 %s69, 1
          %s807 = smul.addr %s806, 64
          %s808 = scalar_lea.vmem [#allocation5], %s807
          %809 = dma.done %s805, 1024
        $region47: #{tpu_custom_call.1} parent=42 // pred_fallthru
          _
      $region43: #{tpu_custom_call.1} parent=5 // pred_fallthru
        _
    $region6: #{tpu_custom_call.1} parent=1 // loop_footer
      %s17 = sadd.s32 1, %s13
    $region7: #{tpu_custom_call.1} parent=1 // loop_footer_branch
      %12 = sbr.rel target = $region3
    $region8: #{tpu_custom_call.1} parent=1 // loop_exit
      _
    %810 = vsyncpa [#allocation3], 1
    %s811 = scalar_lea.sflag [#allocation3], 1
    %812 = vsyncpa %s811, 1
    %813 = vsyncpa [#allocation4], 1
    %s814 = scalar_lea.sflag [#allocation4], 1
    %815 = vsyncpa %s814, 1

</llo_original>
